<compile_context>
chip_gen: v7x
topology: tpu7x:2x2x1
jax: 0.10.0
libtpu: 0.0.40
codegen_flags: <defaults>
</compile_context>

<pallas_src>
import jax
import jax.numpy as jnp
from jax.experimental import pallas as pl
from jax.experimental.pallas import tpu as pltpu


def _edgeconv_gather_kernel(pi_ref, pj_ref, ii_ref, ij_ref, b_ref, out_ref):
    """One (batch, node-tile) step.

    pi_ref / pj_ref : (1, N, Coutp)  projected node tables (full batch row)
    ii_ref / ij_ref : (1, tn, K)     int32 center / neighbor indices
    b_ref           : (1, Coutp)     bias (channel-padded)
    out_ref         : (1, tn, Coutp)

    Gather is done as one-hot @ table on the MXU (robust TPU gather), the max
    over K is a running max, and bias + ReLU are applied once on the reduced
    (tn, Coutp) tile (exact reordering).
    """
    _, n_nodes, _ = pi_ref.shape
    _, tn, K = ii_ref.shape

    pi = pi_ref[0]                      # (N, Coutp) f32
    pj = pj_ref[0]                      # (N, Coutp) f32
    ii = ii_ref[0]                      # (tn, K) int32
    ij = ij_ref[0]                      # (tn, K) int32

    iota = jax.lax.broadcasted_iota(jnp.int32, (tn, n_nodes), 1)

    def edge_term(k):
        # Note: out-of-range indices produce an all-zero one-hot row (contribute
        # 0 pre-bias), unlike torch.gather which would raise.
        oh_i = (ii[:, k:k + 1] == iota).astype(jnp.float32)     # (tn, N)
        oh_j = (ij[:, k:k + 1] == iota).astype(jnp.float32)     # (tn, N)
        return (jnp.dot(oh_i, pi, preferred_element_type=jnp.float32)
                + jnp.dot(oh_j, pj, preferred_element_type=jnp.float32))

    acc = edge_term(0)
    for k in range(1, K):               # K is small & static -> unrolled
        acc = jnp.maximum(acc, edge_term(k))

    # max_k(relu(z_k + b)) == relu(max_k(z_k) + b)  (exact)
    out_ref[0] = jnp.maximum(acc + b_ref[...], 0.0).astype(out_ref.dtype)


def _pick_node_tile(n_nodes, batch, cap=256):
    """Largest node tile that (a) divides N, (b) is a multiple of 8 sublanes
    (or the full N), (c) stays under `cap` rows, preferring >= 2 total grid
    steps so both TensorCores on v7x get work."""
    cands = {n_nodes}
    d = 8
    while d <= min(n_nodes, cap):
        if n_nodes % d == 0:
            cands.add(d)
        d += 8
    ordered = sorted((t for t in cands if t <= cap or t == n_nodes), reverse=True)
    for t in ordered:
        if batch * (n_nodes // t) >= 2:
            return t
    return ordered[0]


def edge_conv2d(x, edge_index, weight, bias, y=None):
    """x: (B, C, N, 1) f32; edge_index: (2, B, N, K) int32;
    weight: (Cout, 2C, 1, 1); bias: (Cout,).  Returns (B, Cout, N, 1) f32."""
    B, C, N, _ = x.shape
    K = edge_index.shape[-1]
    Cout = weight.shape[0]

    # Channels-last node tables.
    xt = jnp.transpose(x[..., 0], (0, 2, 1)).astype(jnp.float32)        # (B, N, C)
    yt = (jnp.transpose(y[..., 0], (0, 2, 1)).astype(jnp.float32)
          if y is not None else xt)

    # Split the 1x1-conv weight over the concat halves and fold the linearity:
    #   conv(concat([x_i, x_j - x_i])) = x_i @ (Wa - Wb)^T + x_j @ Wb^T
    w = weight[:, :, 0, 0].astype(jnp.float32)                          # (Cout, 2C)
    w_i = (w[:, :C] - w[:, C:]).T                                       # (C, Cout)
    w_j = w[:, C:].T                                                    # (C, Cout)

    # Lane-dense output: pad channels to a multiple of 128.
    Coutp = ((Cout + 127) // 128) * 128
    pad = Coutp - Cout
    w_i = jnp.pad(w_i, ((0, 0), (0, pad)))
    w_j = jnp.pad(w_j, ((0, 0), (0, pad)))
    b = jnp.pad(bias.astype(jnp.float32), (0, pad)).reshape(1, Coutp)

    # Project every node ONCE with each half of W (small matmuls, XLA-handled).
    p_i = jnp.einsum('bnc,co->bno', xt, w_i)                            # (B, N, Coutp)
    p_j = jnp.einsum('bnc,co->bno', yt, w_j)                            # (B, N, Coutp)

    idx_i = edge_index[1].astype(jnp.int32)                             # (B, N, K) centers
    idx_j = edge_index[0].astype(jnp.int32)                             # (B, N, K) neighbors

    tn = _pick_node_tile(N, B)
    grid = (B, N // tn)

    out = pl.pallas_call(
        _edgeconv_gather_kernel,
        out_shape=jax.ShapeDtypeStruct((B, N, Coutp), jnp.float32),
        grid_spec=pltpu.PrefetchScalarGridSpec(
            num_scalar_prefetch=0,
            grid=grid,
            in_specs=[
                # Full per-batch projection tables stay resident across node tiles
                # (block index constant in the inner grid axis -> no re-DMA).
                pl.BlockSpec((1, N, Coutp), lambda bb, t: (bb, 0, 0)),
                pl.BlockSpec((1, N, Coutp), lambda bb, t: (bb, 0, 0)),
                pl.BlockSpec((1, tn, K), lambda bb, t: (bb, t, 0)),
                pl.BlockSpec((1, tn, K), lambda bb, t: (bb, t, 0)),
                pl.BlockSpec((1, Coutp), lambda bb, t: (0, 0)),
            ],
            out_specs=pl.BlockSpec((1, tn, Coutp), lambda bb, t: (bb, t, 0)),
        ),
        compiler_params=pltpu.CompilerParams(
            dimension_semantics=("parallel", "parallel")),
    )(p_i, p_j, idx_i, idx_j, b)

    out = out[..., :Cout]                                               # drop channel pad
    # Back to PyTorch convention (B, Cout, N, 1).
    return jnp.transpose(out, (0, 2, 1))[..., None]


def edge_conv2d_ref(x, edge_index, weight, bias, y=None):
    """Pure-JAX reference mirroring the PyTorch forward."""
    xs = x[..., 0]
    ys = y[..., 0] if y is not None else xs
    x_i = jnp.take_along_axis(xs[:, :, :, None], edge_index[1][:, None, :, :], axis=2)
    x_j = jnp.take_along_axis(ys[:, :, :, None], edge_index[0][:, None, :, :], axis=2)
    feat = jnp.concatenate([x_i, x_j - x_i], axis=1)                    # (B, 2C, N, K)
    w = weight[:, :, 0, 0]                                              # (Cout, 2C)
    conv = jnp.einsum('oc,bcnk->bonk', w, feat) + bias[None, :, None, None]
    act = jnp.maximum(conv, 0.0)
    return jnp.max(act, axis=-1, keepdims=True)


if __name__ == "__main__":
    B, C, N, K, Cout = 2, 4, 16, 8, 8   # in_channels=4, out_channels=8
    key = jax.random.PRNGKey(0)
    k1, k2, k3, k4 = jax.random.split(key, 4)

    x = jax.random.normal(k1, (B, C, N, 1), dtype=jnp.float32)
    edge_index = jax.random.randint(k2, (2, B, N, K), 0, N, dtype=jnp.int32)
    # Deterministic synthetic Conv2d(2C, Cout, 1, bias=True) parameters
    weight = jax.random.normal(k3, (Cout, 2 * C, 1, 1), dtype=jnp.float32) * 0.1
    bias = jax.random.normal(k4, (Cout,), dtype=jnp.float32) * 0.1

    out = jax.block_until_ready(edge_conv2d(x, edge_index, weight, bias))
    ref = edge_conv2d_ref(x, edge_index, weight, bias)

    assert out.shape == (B, Cout, N, 1), out.shape
    max_err = float(jnp.max(jnp.abs(out - ref)))
    assert jnp.allclose(out, ref, atol=1e-4, rtol=1e-4), max_err
    print("KERNEL_OK")
</pallas_src>

<mosaic_0001>
module attributes {stable_mosaic.version = 11 : i64} {
  func.func @_edgeconv_gather_kernel(%arg0: i32, %arg1: i32, %arg2: memref<1x16x128xf32, #tpu.memory_space<vmem>>, %arg3: memref<1x16x128xf32, #tpu.memory_space<vmem>>, %arg4: memref<1x16x8xi32, #tpu.memory_space<vmem>>, %arg5: memref<1x16x8xi32, #tpu.memory_space<vmem>>, %arg6: memref<1x128xf32, #tpu.memory_space<vmem>>, %arg7: memref<1x16x128xf32, #tpu.memory_space<vmem>>) attributes {dimension_semantics = [#tpu.dimension_semantics<parallel>, #tpu.dimension_semantics<parallel>], iteration_bounds = array<i64: 2, 1>, scalar_prefetch = 0 : i64, scratch_operands = 0 : i64, tpu.core_type = #tpu.core_type<tc>, window_params = [{transform_indices = @transform_0, window_bounds = array<i64: 1, 16, 128>}, {transform_indices = @transform_1, window_bounds = array<i64: 1, 16, 128>}, {transform_indices = @transform_2, window_bounds = array<i64: 1, 16, 8>}, {transform_indices = @transform_3, window_bounds = array<i64: 1, 16, 8>}, {pipeline_mode = #tpu.pipeline_mode<synchronous>, transform_indices = @transform_4, window_bounds = array<i64: 1, 128>}, {transform_indices = @transform_5, window_bounds = array<i64: 1, 16, 128>}]} {
    %c0 = arith.constant 0 : index
    %c0_0 = arith.constant 0 : index
    %c0_1 = arith.constant 0 : index
    %0 = vector.load %arg2[%c0, %c0_0, %c0_1] : memref<1x16x128xf32, #tpu.memory_space<vmem>>, vector<1x16x128xf32>
    %1 = vector.shape_cast %0 : vector<1x16x128xf32> to vector<16x128xf32>
    %c0_2 = arith.constant 0 : index
    %c0_3 = arith.constant 0 : index
    %c0_4 = arith.constant 0 : index
    %2 = vector.load %arg3[%c0_2, %c0_3, %c0_4] : memref<1x16x128xf32, #tpu.memory_space<vmem>>, vector<1x16x128xf32>
    %3 = vector.shape_cast %2 : vector<1x16x128xf32> to vector<16x128xf32>
    %c0_5 = arith.constant 0 : index
    %c0_6 = arith.constant 0 : index
    %c0_7 = arith.constant 0 : index
    %4 = vector.load %arg4[%c0_5, %c0_6, %c0_7] : memref<1x16x8xi32, #tpu.memory_space<vmem>>, vector<1x16x8xi32>
    %5 = vector.shape_cast %4 : vector<1x16x8xi32> to vector<16x8xi32>
    %c0_8 = arith.constant 0 : index
    %c0_9 = arith.constant 0 : index
    %c0_10 = arith.constant 0 : index
    %6 = vector.load %arg5[%c0_8, %c0_9, %c0_10] : memref<1x16x8xi32, #tpu.memory_space<vmem>>, vector<1x16x8xi32>
    %7 = vector.shape_cast %6 : vector<1x16x8xi32> to vector<16x8xi32>
    %8 = tpu.iota {dimensions = array<i32: 1>} : vector<16x16xi32>
    %9 = vector.extract_strided_slice %5 {offsets = [0, 0], sizes = [16, 1], strides = [1, 1]} : vector<16x8xi32> to vector<16x1xi32>
    %10 = vector.broadcast %9 : vector<16x1xi32> to vector<16x16xi32>
    %11 = arith.cmpi eq, %10, %8 : vector<16x16xi32>
    %12 = arith.extui %11 : vector<16x16xi1> to vector<16x16xi32>
    %13 = arith.sitofp %12 : vector<16x16xi32> to vector<16x16xf32>
    %14 = vector.extract_strided_slice %7 {offsets = [0, 0], sizes = [16, 1], strides = [1, 1]} : vector<16x8xi32> to vector<16x1xi32>
    %15 = vector.broadcast %14 : vector<16x1xi32> to vector<16x16xi32>
    %16 = arith.cmpi eq, %15, %8 : vector<16x16xi32>
    %17 = arith.extui %16 : vector<16x16xi1> to vector<16x16xi32>
    %18 = arith.sitofp %17 : vector<16x16xi32> to vector<16x16xf32>
    %cst = arith.constant dense<0.000000e+00> : vector<16x128xf32>
    %19 = tpu.matmul %13, %1, %cst {dimension_numbers = #tpu.dot_dimension_numbers<[1], [0], [0], [1], [0, 0, 1, 1], [], []>} : vector<16x16xf32>, vector<16x128xf32>, vector<16x128xf32> -> vector<16x128xf32>
    %cst_11 = arith.constant dense<0.000000e+00> : vector<16x128xf32>
    %20 = tpu.matmul %18, %3, %cst_11 {dimension_numbers = #tpu.dot_dimension_numbers<[1], [0], [0], [1], [0, 0, 1, 1], [], []>} : vector<16x16xf32>, vector<16x128xf32>, vector<16x128xf32> -> vector<16x128xf32>
    %21 = arith.addf %19, %20 : vector<16x128xf32>
    %22 = vector.extract_strided_slice %5 {offsets = [0, 1], sizes = [16, 1], strides = [1, 1]} : vector<16x8xi32> to vector<16x1xi32>
    %23 = vector.broadcast %22 : vector<16x1xi32> to vector<16x16xi32>
    %24 = arith.cmpi eq, %23, %8 : vector<16x16xi32>
    %25 = arith.extui %24 : vector<16x16xi1> to vector<16x16xi32>
    %26 = arith.sitofp %25 : vector<16x16xi32> to vector<16x16xf32>
    %27 = vector.extract_strided_slice %7 {offsets = [0, 1], sizes = [16, 1], strides = [1, 1]} : vector<16x8xi32> to vector<16x1xi32>
    %28 = vector.broadcast %27 : vector<16x1xi32> to vector<16x16xi32>
    %29 = arith.cmpi eq, %28, %8 : vector<16x16xi32>
    %30 = arith.extui %29 : vector<16x16xi1> to vector<16x16xi32>
    %31 = arith.sitofp %30 : vector<16x16xi32> to vector<16x16xf32>
    %cst_12 = arith.constant dense<0.000000e+00> : vector<16x128xf32>
    %32 = tpu.matmul %26, %1, %cst_12 {dimension_numbers = #tpu.dot_dimension_numbers<[1], [0], [0], [1], [0, 0, 1, 1], [], []>} : vector<16x16xf32>, vector<16x128xf32>, vector<16x128xf32> -> vector<16x128xf32>
    %cst_13 = arith.constant dense<0.000000e+00> : vector<16x128xf32>
    %33 = tpu.matmul %31, %3, %cst_13 {dimension_numbers = #tpu.dot_dimension_numbers<[1], [0], [0], [1], [0, 0, 1, 1], [], []>} : vector<16x16xf32>, vector<16x128xf32>, vector<16x128xf32> -> vector<16x128xf32>
    %34 = arith.addf %32, %33 : vector<16x128xf32>
    %35 = arith.maximumf %21, %34 : vector<16x128xf32>
    %36 = vector.extract_strided_slice %5 {offsets = [0, 2], sizes = [16, 1], strides = [1, 1]} : vector<16x8xi32> to vector<16x1xi32>
    %37 = vector.broadcast %36 : vector<16x1xi32> to vector<16x16xi32>
    %38 = arith.cmpi eq, %37, %8 : vector<16x16xi32>
    %39 = arith.extui %38 : vector<16x16xi1> to vector<16x16xi32>
    %40 = arith.sitofp %39 : vector<16x16xi32> to vector<16x16xf32>
    %41 = vector.extract_strided_slice %7 {offsets = [0, 2], sizes = [16, 1], strides = [1, 1]} : vector<16x8xi32> to vector<16x1xi32>
    %42 = vector.broadcast %41 : vector<16x1xi32> to vector<16x16xi32>
    %43 = arith.cmpi eq, %42, %8 : vector<16x16xi32>
    %44 = arith.extui %43 : vector<16x16xi1> to vector<16x16xi32>
    %45 = arith.sitofp %44 : vector<16x16xi32> to vector<16x16xf32>
    %cst_14 = arith.constant dense<0.000000e+00> : vector<16x128xf32>
    %46 = tpu.matmul %40, %1, %cst_14 {dimension_numbers = #tpu.dot_dimension_numbers<[1], [0], [0], [1], [0, 0, 1, 1], [], []>} : vector<16x16xf32>, vector<16x128xf32>, vector<16x128xf32> -> vector<16x128xf32>
    %cst_15 = arith.constant dense<0.000000e+00> : vector<16x128xf32>
    %47 = tpu.matmul %45, %3, %cst_15 {dimension_numbers = #tpu.dot_dimension_numbers<[1], [0], [0], [1], [0, 0, 1, 1], [], []>} : vector<16x16xf32>, vector<16x128xf32>, vector<16x128xf32> -> vector<16x128xf32>
    %48 = arith.addf %46, %47 : vector<16x128xf32>
    %49 = arith.maximumf %35, %48 : vector<16x128xf32>
    %50 = vector.extract_strided_slice %5 {offsets = [0, 3], sizes = [16, 1], strides = [1, 1]} : vector<16x8xi32> to vector<16x1xi32>
    %51 = vector.broadcast %50 : vector<16x1xi32> to vector<16x16xi32>
    %52 = arith.cmpi eq, %51, %8 : vector<16x16xi32>
    %53 = arith.extui %52 : vector<16x16xi1> to vector<16x16xi32>
    %54 = arith.sitofp %53 : vector<16x16xi32> to vector<16x16xf32>
    %55 = vector.extract_strided_slice %7 {offsets = [0, 3], sizes = [16, 1], strides = [1, 1]} : vector<16x8xi32> to vector<16x1xi32>
    %56 = vector.broadcast %55 : vector<16x1xi32> to vector<16x16xi32>
    %57 = arith.cmpi eq, %56, %8 : vector<16x16xi32>
    %58 = arith.extui %57 : vector<16x16xi1> to vector<16x16xi32>
    %59 = arith.sitofp %58 : vector<16x16xi32> to vector<16x16xf32>
    %cst_16 = arith.constant dense<0.000000e+00> : vector<16x128xf32>
    %60 = tpu.matmul %54, %1, %cst_16 {dimension_numbers = #tpu.dot_dimension_numbers<[1], [0], [0], [1], [0, 0, 1, 1], [], []>} : vector<16x16xf32>, vector<16x128xf32>, vector<16x128xf32> -> vector<16x128xf32>
    %cst_17 = arith.constant dense<0.000000e+00> : vector<16x128xf32>
    %61 = tpu.matmul %59, %3, %cst_17 {dimension_numbers = #tpu.dot_dimension_numbers<[1], [0], [0], [1], [0, 0, 1, 1], [], []>} : vector<16x16xf32>, vector<16x128xf32>, vector<16x128xf32> -> vector<16x128xf32>
    %62 = arith.addf %60, %61 : vector<16x128xf32>
    %63 = arith.maximumf %49, %62 : vector<16x128xf32>
    %64 = vector.extract_strided_slice %5 {offsets = [0, 4], sizes = [16, 1], strides = [1, 1]} : vector<16x8xi32> to vector<16x1xi32>
    %65 = vector.broadcast %64 : vector<16x1xi32> to vector<16x16xi32>
    %66 = arith.cmpi eq, %65, %8 : vector<16x16xi32>
    %67 = arith.extui %66 : vector<16x16xi1> to vector<16x16xi32>
    %68 = arith.sitofp %67 : vector<16x16xi32> to vector<16x16xf32>
    %69 = vector.extract_strided_slice %7 {offsets = [0, 4], sizes = [16, 1], strides = [1, 1]} : vector<16x8xi32> to vector<16x1xi32>
    %70 = vector.broadcast %69 : vector<16x1xi32> to vector<16x16xi32>
    %71 = arith.cmpi eq, %70, %8 : vector<16x16xi32>
    %72 = arith.extui %71 : vector<16x16xi1> to vector<16x16xi32>
    %73 = arith.sitofp %72 : vector<16x16xi32> to vector<16x16xf32>
    %cst_18 = arith.constant dense<0.000000e+00> : vector<16x128xf32>
    %74 = tpu.matmul %68, %1, %cst_18 {dimension_numbers = #tpu.dot_dimension_numbers<[1], [0], [0], [1], [0, 0, 1, 1], [], []>} : vector<16x16xf32>, vector<16x128xf32>, vector<16x128xf32> -> vector<16x128xf32>
    %cst_19 = arith.constant dense<0.000000e+00> : vector<16x128xf32>
    %75 = tpu.matmul %73, %3, %cst_19 {dimension_numbers = #tpu.dot_dimension_numbers<[1], [0], [0], [1], [0, 0, 1, 1], [], []>} : vector<16x16xf32>, vector<16x128xf32>, vector<16x128xf32> -> vector<16x128xf32>
    %76 = arith.addf %74, %75 : vector<16x128xf32>
    %77 = arith.maximumf %63, %76 : vector<16x128xf32>
    %78 = vector.extract_strided_slice %5 {offsets = [0, 5], sizes = [16, 1], strides = [1, 1]} : vector<16x8xi32> to vector<16x1xi32>
    %79 = vector.broadcast %78 : vector<16x1xi32> to vector<16x16xi32>
    %80 = arith.cmpi eq, %79, %8 : vector<16x16xi32>
    %81 = arith.extui %80 : vector<16x16xi1> to vector<16x16xi32>
    %82 = arith.sitofp %81 : vector<16x16xi32> to vector<16x16xf32>
    %83 = vector.extract_strided_slice %7 {offsets = [0, 5], sizes = [16, 1], strides = [1, 1]} : vector<16x8xi32> to vector<16x1xi32>
    %84 = vector.broadcast %83 : vector<16x1xi32> to vector<16x16xi32>
    %85 = arith.cmpi eq, %84, %8 : vector<16x16xi32>
    %86 = arith.extui %85 : vector<16x16xi1> to vector<16x16xi32>
    %87 = arith.sitofp %86 : vector<16x16xi32> to vector<16x16xf32>
    %cst_20 = arith.constant dense<0.000000e+00> : vector<16x128xf32>
    %88 = tpu.matmul %82, %1, %cst_20 {dimension_numbers = #tpu.dot_dimension_numbers<[1], [0], [0], [1], [0, 0, 1, 1], [], []>} : vector<16x16xf32>, vector<16x128xf32>, vector<16x128xf32> -> vector<16x128xf32>
    %cst_21 = arith.constant dense<0.000000e+00> : vector<16x128xf32>
    %89 = tpu.matmul %87, %3, %cst_21 {dimension_numbers = #tpu.dot_dimension_numbers<[1], [0], [0], [1], [0, 0, 1, 1], [], []>} : vector<16x16xf32>, vector<16x128xf32>, vector<16x128xf32> -> vector<16x128xf32>
    %90 = arith.addf %88, %89 : vector<16x128xf32>
    %91 = arith.maximumf %77, %90 : vector<16x128xf32>
    %92 = vector.extract_strided_slice %5 {offsets = [0, 6], sizes = [16, 1], strides = [1, 1]} : vector<16x8xi32> to vector<16x1xi32>
    %93 = vector.broadcast %92 : vector<16x1xi32> to vector<16x16xi32>
    %94 = arith.cmpi eq, %93, %8 : vector<16x16xi32>
    %95 = arith.extui %94 : vector<16x16xi1> to vector<16x16xi32>
    %96 = arith.sitofp %95 : vector<16x16xi32> to vector<16x16xf32>
    %97 = vector.extract_strided_slice %7 {offsets = [0, 6], sizes = [16, 1], strides = [1, 1]} : vector<16x8xi32> to vector<16x1xi32>
    %98 = vector.broadcast %97 : vector<16x1xi32> to vector<16x16xi32>
    %99 = arith.cmpi eq, %98, %8 : vector<16x16xi32>
    %100 = arith.extui %99 : vector<16x16xi1> to vector<16x16xi32>
    %101 = arith.sitofp %100 : vector<16x16xi32> to vector<16x16xf32>
    %cst_22 = arith.constant dense<0.000000e+00> : vector<16x128xf32>
    %102 = tpu.matmul %96, %1, %cst_22 {dimension_numbers = #tpu.dot_dimension_numbers<[1], [0], [0], [1], [0, 0, 1, 1], [], []>} : vector<16x16xf32>, vector<16x128xf32>, vector<16x128xf32> -> vector<16x128xf32>
    %cst_23 = arith.constant dense<0.000000e+00> : vector<16x128xf32>
    %103 = tpu.matmul %101, %3, %cst_23 {dimension_numbers = #tpu.dot_dimension_numbers<[1], [0], [0], [1], [0, 0, 1, 1], [], []>} : vector<16x16xf32>, vector<16x128xf32>, vector<16x128xf32> -> vector<16x128xf32>
    %104 = arith.addf %102, %103 : vector<16x128xf32>
    %105 = arith.maximumf %91, %104 : vector<16x128xf32>
    %106 = vector.extract_strided_slice %5 {offsets = [0, 7], sizes = [16, 1], strides = [1, 1]} : vector<16x8xi32> to vector<16x1xi32>
    %107 = vector.broadcast %106 : vector<16x1xi32> to vector<16x16xi32>
    %108 = arith.cmpi eq, %107, %8 : vector<16x16xi32>
    %109 = arith.extui %108 : vector<16x16xi1> to vector<16x16xi32>
    %110 = arith.sitofp %109 : vector<16x16xi32> to vector<16x16xf32>
    %111 = vector.extract_strided_slice %7 {offsets = [0, 7], sizes = [16, 1], strides = [1, 1]} : vector<16x8xi32> to vector<16x1xi32>
    %112 = vector.broadcast %111 : vector<16x1xi32> to vector<16x16xi32>
    %113 = arith.cmpi eq, %112, %8 : vector<16x16xi32>
    %114 = arith.extui %113 : vector<16x16xi1> to vector<16x16xi32>
    %115 = arith.sitofp %114 : vector<16x16xi32> to vector<16x16xf32>
    %cst_24 = arith.constant dense<0.000000e+00> : vector<16x128xf32>
    %116 = tpu.matmul %110, %1, %cst_24 {dimension_numbers = #tpu.dot_dimension_numbers<[1], [0], [0], [1], [0, 0, 1, 1], [], []>} : vector<16x16xf32>, vector<16x128xf32>, vector<16x128xf32> -> vector<16x128xf32>
    %cst_25 = arith.constant dense<0.000000e+00> : vector<16x128xf32>
    %117 = tpu.matmul %115, %3, %cst_25 {dimension_numbers = #tpu.dot_dimension_numbers<[1], [0], [0], [1], [0, 0, 1, 1], [], []>} : vector<16x16xf32>, vector<16x128xf32>, vector<16x128xf32> -> vector<16x128xf32>
    %118 = arith.addf %116, %117 : vector<16x128xf32>
    %119 = arith.maximumf %105, %118 : vector<16x128xf32>
    %c0_26 = arith.constant 0 : index
    %c0_27 = arith.constant 0 : index
    %120 = vector.load %arg6[%c0_26, %c0_27] : memref<1x128xf32, #tpu.memory_space<vmem>>, vector<1x128xf32>
    %121 = vector.broadcast %120 : vector<1x128xf32> to vector<16x128xf32>
    %122 = arith.addf %119, %121 : vector<16x128xf32>
    %cst_28 = arith.constant 0.000000e+00 : f32
    %123 = vector.broadcast %cst_28 : f32 to vector<16x128xf32>
    %124 = arith.maximumf %122, %123 : vector<16x128xf32>
    %c0_29 = arith.constant 0 : index
    %c0_30 = arith.constant 0 : index
    %c0_31 = arith.constant 0 : index
    %125 = vector.load %arg7[%c0_29, %c0_30, %c0_31] : memref<1x16x128xf32, #tpu.memory_space<vmem>>, vector<1x16x128xf32>
    %126 = vector.shape_cast %125 : vector<1x16x128xf32> to vector<16x128xf32>
    %127 = vector.shape_cast %124 : vector<16x128xf32> to vector<1x16x128xf32>
    tpu.vector_store %arg7[%c0_29, %c0_30, %c0_31], %127 {strides = array<i32>} : memref<1x16x128xf32, #tpu.memory_space<vmem>>, vector<1x16x128xf32>,
    return
  }
  func.func @transform_0(%arg0: i32, %arg1: i32) -> (i32, i32, i32) {
    %c0_i32 = arith.constant 0 : i32
    %c0_i32_0 = arith.constant 0 : i32
    %c0_i32_1 = arith.constant 0 : i32
    return %arg0, %c0_i32, %c0_i32_0 : i32, i32, i32
  }
  func.func @transform_1(%arg0: i32, %arg1: i32) -> (i32, i32, i32) {
    %c0_i32 = arith.constant 0 : i32
    %c0_i32_0 = arith.constant 0 : i32
    %c0_i32_1 = arith.constant 0 : i32
    return %arg0, %c0_i32, %c0_i32_0 : i32, i32, i32
  }
  func.func @transform_2(%arg0: i32, %arg1: i32) -> (i32, i32, i32) {
    %c0_i32 = arith.constant 0 : i32
    %c0_i32_0 = arith.constant 0 : i32
    return %arg0, %arg1, %c0_i32 : i32, i32, i32
  }
  func.func @transform_3(%arg0: i32, %arg1: i32) -> (i32, i32, i32) {
    %c0_i32 = arith.constant 0 : i32
    %c0_i32_0 = arith.constant 0 : i32
    return %arg0, %arg1, %c0_i32 : i32, i32, i32
  }
  func.func @transform_4(%arg0: i32, %arg1: i32) -> (i32, i32) {
    %c0_i32 = arith.constant 0 : i32
    %c0_i32_0 = arith.constant 0 : i32
    %c0_i32_1 = arith.constant 0 : i32
    return %c0_i32, %c0_i32_0 : i32, i32
  }
  func.func @transform_5(%arg0: i32, %arg1: i32) -> (i32, i32, i32) {
    %c0_i32 = arith.constant 0 : i32
    %c0_i32_0 = arith.constant 0 : i32
    return %arg0, %arg1, %c0_i32 : i32, i32, i32
  }
}

</mosaic_0001>

<llo_original>
// kernel: tpu_custom_call.1
$region0: #{tpu_custom_call.1}
  #allocation0 [shape = 'u32[]', space=smem, size = 0x4, offset = 0x4, fixed_abs, tag = 'smem constant byte address 0x4 - core index']
  #allocation1 [shape = 'u32[144,128]{1,0:T(1,128)}', space=vmem, size = 0x12000, scoped, tag = 'internal scratch']
  %s0 = inlined_call_operand.vmem [shape: f32[2,16,128], index: 0, kind: input, shape index: {}]
  %s1 = inlined_call_operand.vmem [shape: f32[2,16,128], index: 1, kind: input, shape index: {}]
  %s2 = inlined_call_operand.vmem [shape: s32[2,16,8], index: 2, kind: input, shape index: {}]
  %s3 = inlined_call_operand.vmem [shape: s32[2,16,8], index: 3, kind: input, shape index: {}]
  %s4 = inlined_call_operand.vmem [shape: f32[1,128], index: 4, kind: input, shape index: {}]
  %s5 = inlined_call_operand.hbm [shape: f32[2,16,128], index: 5, kind: output, shape index: {}]
  %s6 = sld [smem:[#allocation0]]
  $region53: #{tpu_custom_call.1} parent=0
    _
  %s8 = ssub.s32 1, %s6
  %s9 = scalar_select 0, %s8, %s6
  $region1: #{tpu_custom_call.1} parent=0
    #allocation2 [shape = 'u8[16384]{0}', space=vmem, size = 0x4000, scoped, tag = 'output window, operand 0']
    #allocation3 [shape = 's32[2]{0}', space=sflag, size = 0x8, scoped, tag = 'scoped memory for tpu_custom_call.1']
    %10 = vsyncpa [#allocation3], 0
    %s11 = scalar_lea.sflag [#allocation3], 1
    %12 = vsyncpa %s11, 0
    loop: start=0, step=1, limit=4
    $region2: #{tpu_custom_call.1} parent=1 // loop_pre_header
      _
    $region3: #{tpu_custom_call.1} parent=1 // loop_header
      %s14 = sphi 0, %s18
      %p15 = scmp.ge.s32.totalorder %s14, 4
      %s21 = sphi 0, %s33
      %s22 = sphi 0, %s29
      %s23 = sphi 0, %s21
      %s24 = sphi 0, %s22
      %s25 = sphi 0, %s23
      %s26 = sphi 0, %s24
      %s36 = sphi 0, %s38
      %s39 = sphi 0, %s36
      %s40 = sphi 0, %s39
      %s56 = sphi 0, %s40
      %s62 = sphi 0, %s64
      %s65 = sphi 0, %s62
      %s66 = sphi 0, %s65
      %s82 = sphi 0, %s66
      %s90 = sphi 0, %s92
      %s93 = sphi 0, %s90
      %s94 = sphi 0, %s93
      %s110 = sphi 0, %s94
      %s118 = sphi 0, %s120
      %s121 = sphi 0, %s118
      %s122 = sphi 0, %s121
      %s138 = sphi 0, %s122
      %s142 = sphi 0, %s142
      %s144 = sphi 0, %s142
      %s145 = sphi 0, %s144
      %s159 = sphi 0, %s145
      %s167 = sphi 0, %s169
      %s170 = sphi 0, %s167
      %s171 = sphi 0, %s170
      %s187 = sphi 0, %s171
    $region4: #{tpu_custom_call.1} parent=1 // loop_header_branch
      %17 = sbr.rel (%p15) target = $region8
    $region5: #{tpu_custom_call.1} parent=1 // loop_body
      %s19 = ssub.s32 %s14, 1
      %s20 = ssub.s32 %s14, 2
      %s27 = sadd.s32 1, %s22
      %p28 = scmp.ge.s32.totalorder %s27, 1
      %s29 = scalar_select %p28, 0, %s27
      %s30 = sadd.s32 1, %s21
      %s31 = scalar_select %p28, %s30, %s21
      %p32 = scmp.ge.s32.totalorder %s31, 2
      %s33 = scalar_select %p32, 0, %s31
      %s34 = ssub.s32 %s21, %s33
      %p35 = scmp.eq.s32.totalorder %s34, 0
      %s37 = sadd.s32 %s36, 1
      %s38 = scalar_select %p35, %s36, %s37
      %p41 = pneg %p35
      %p42 = scmp.eq.s32.totalorder %s14, 1
      %p43 = por %p41, %p42
      %p44 = scmp.ne.s32.totalorder %s36, %s39
      %p45 = scmp.eq.s32.totalorder %s14, 0
      %p46 = por %p44, %p45
      %p47 = scmp.ne.s32.totalorder %s36, %s39
      %p48 = scmp.eq.s32.totalorder %s19, 1
      %p49 = por %p47, %p48
      %p50 = scmp.ne.s32.totalorder %s39, %s40
      %p51 = scmp.eq.s32.totalorder %s19, 0
      %p52 = por %p50, %p51
      %p53 = scmp.ne.s32.totalorder %s39, %s40
      %p54 = scmp.eq.s32.totalorder %s20, 1
      %p55 = por %p53, %p54
      %p57 = scmp.ne.s32.totalorder %s40, %s56
      %p58 = scmp.eq.s32.totalorder %s20, 0
      %p59 = por %p57, %p58
      %s60 = ssub.s32 %s21, %s33
      %p61 = scmp.eq.s32.totalorder %s60, 0
      %s63 = sadd.s32 %s62, 1
      %s64 = scalar_select %p61, %s62, %s63
      %p67 = pneg %p61
      %p68 = scmp.eq.s32.totalorder %s14, 1
      %p69 = por %p67, %p68
      %p70 = scmp.ne.s32.totalorder %s62, %s65
      %p71 = scmp.eq.s32.totalorder %s14, 0
      %p72 = por %p70, %p71
      %p73 = scmp.ne.s32.totalorder %s62, %s65
      %p74 = scmp.eq.s32.totalorder %s19, 1
      %p75 = por %p73, %p74
      %p76 = scmp.ne.s32.totalorder %s65, %s66
      %p77 = scmp.eq.s32.totalorder %s19, 0
      %p78 = por %p76, %p77
      %p79 = scmp.ne.s32.totalorder %s65, %s66
      %p80 = scmp.eq.s32.totalorder %s20, 1
      %p81 = por %p79, %p80
      %p83 = scmp.ne.s32.totalorder %s66, %s82
      %p84 = scmp.eq.s32.totalorder %s20, 0
      %p85 = por %p83, %p84
      %s86 = ssub.s32 %s21, %s33
      %s87 = ssub.s32 %s22, %s29
      %s88 = sor.u32 %s86, %s87
      %p89 = scmp.eq.s32.totalorder %s88, 0
      %s91 = sadd.s32 %s90, 1
      %s92 = scalar_select %p89, %s90, %s91
      %p95 = pneg %p89
      %p96 = scmp.eq.s32.totalorder %s14, 1
      %p97 = por %p95, %p96
      %p98 = scmp.ne.s32.totalorder %s90, %s93
      %p99 = scmp.eq.s32.totalorder %s14, 0
      %p100 = por %p98, %p99
      %p101 = scmp.ne.s32.totalorder %s90, %s93
      %p102 = scmp.eq.s32.totalorder %s19, 1
      %p103 = por %p101, %p102
      %p104 = scmp.ne.s32.totalorder %s93, %s94
      %p105 = scmp.eq.s32.totalorder %s19, 0
      %p106 = por %p104, %p105
      %p107 = scmp.ne.s32.totalorder %s93, %s94
      %p108 = scmp.eq.s32.totalorder %s20, 1
      %p109 = por %p107, %p108
      %p111 = scmp.ne.s32.totalorder %s94, %s110
      %p112 = scmp.eq.s32.totalorder %s20, 0
      %p113 = por %p111, %p112
      %s114 = ssub.s32 %s21, %s33
      %s115 = ssub.s32 %s22, %s29
      %s116 = sor.u32 %s114, %s115
      %p117 = scmp.eq.s32.totalorder %s116, 0
      %s119 = sadd.s32 %s118, 1
      %s120 = scalar_select %p117, %s118, %s119
      %p123 = pneg %p117
      %p124 = scmp.eq.s32.totalorder %s14, 1
      %p125 = por %p123, %p124
      %p126 = scmp.ne.s32.totalorder %s118, %s121
      %p127 = scmp.eq.s32.totalorder %s14, 0
      %p128 = por %p126, %p127
      %p129 = scmp.ne.s32.totalorder %s118, %s121
      %p130 = scmp.eq.s32.totalorder %s19, 1
      %p131 = por %p129, %p130
      %p132 = scmp.ne.s32.totalorder %s121, %s122
      %p133 = scmp.eq.s32.totalorder %s19, 0
      %p134 = por %p132, %p133
      %p135 = scmp.ne.s32.totalorder %s121, %s122
      %p136 = scmp.eq.s32.totalorder %s20, 1
      %p137 = por %p135, %p136
      %p139 = scmp.ne.s32.totalorder %s122, %s138
      %p140 = scmp.eq.s32.totalorder %s20, 0
      %p141 = por %p139, %p140
      %s143 = sadd.s32 %s142, 1
      %p146 = scmp.eq.s32.totalorder %s14, 1
      %p147 = scmp.ne.s32.totalorder %s142, %s144
      %p148 = scmp.eq.s32.totalorder %s14, 0
      %p149 = por %p147, %p148
      %p150 = scmp.ne.s32.totalorder %s142, %s144
      %p151 = scmp.eq.s32.totalorder %s19, 1
      %p152 = por %p150, %p151
      %p153 = scmp.ne.s32.totalorder %s144, %s145
      %p154 = scmp.eq.s32.totalorder %s19, 0
      %p155 = por %p153, %p154
      %p156 = scmp.ne.s32.totalorder %s144, %s145
      %p157 = scmp.eq.s32.totalorder %s20, 1
      %p158 = por %p156, %p157
      %p160 = scmp.ne.s32.totalorder %s145, %s159
      %p161 = scmp.eq.s32.totalorder %s20, 0
      %p162 = por %p160, %p161
      %s163 = ssub.s32 %s21, %s33
      %s164 = ssub.s32 %s22, %s29
      %s165 = sor.u32 %s163, %s164
      %p166 = scmp.eq.s32.totalorder %s165, 0
      %s168 = sadd.s32 %s167, 1
      %s169 = scalar_select %p166, %s167, %s168
      %p172 = pneg %p166
      %p173 = scmp.eq.s32.totalorder %s14, 1
      %p174 = por %p172, %p173
      %p175 = scmp.ne.s32.totalorder %s167, %s170
      %p176 = scmp.eq.s32.totalorder %s14, 0
      %p177 = por %p175, %p176
      %p178 = scmp.ne.s32.totalorder %s167, %s170
      %p179 = scmp.eq.s32.totalorder %s19, 1
      %p180 = por %p178, %p179
      %p181 = scmp.ne.s32.totalorder %s170, %s171
      %p182 = scmp.eq.s32.totalorder %s19, 0
      %p183 = por %p181, %p182
      %p184 = scmp.ne.s32.totalorder %s170, %s171
      %p185 = scmp.eq.s32.totalorder %s20, 1
      %p186 = por %p184, %p185
      %p188 = scmp.ne.s32.totalorder %s171, %s187
      %p189 = scmp.eq.s32.totalorder %s20, 0
      %p190 = por %p188, %p189
      %p191 = scmp.le.s32.totalorder 1, %s14
      %p192 = scmp.lt.s32.totalorder %s14, 3
      %p193 = pnand %p191, %p192
      %p194 = pneg %p193
      // Predicated region
      $region9: #{tpu_custom_call.1} parent=5 // pred_check
        _
      $region10: #{tpu_custom_call.1} parent=5 // pred_check_branch
        %196 = sbr.rel (%p193) target = $region12
      $region11: #{tpu_custom_call.1} parent=5 // pred_region
        %s197 = ssub.s32 %s14, 1
        // Predicated region
        $region13: #{tpu_custom_call.1} parent=11 // pred_check
          %p198 = pneg %p155
        $region14: #{tpu_custom_call.1} parent=11 // pred_check_branch
          %200 = sbr.rel (%p198) target = $region16
        $region15: #{tpu_custom_call.1} parent=11 // pred_region
          _
        $region16: #{tpu_custom_call.1} parent=11 // pred_fallthru
          _
      $region12: #{tpu_custom_call.1} parent=5 // pred_fallthru
        _
      %p201 = scmp.lt.s32.totalorder %s14, 2
      // Predicated region
      $region17: #{tpu_custom_call.1} parent=5 // pred_check
        %p202 = pneg %p201
      $region18: #{tpu_custom_call.1} parent=5 // pred_check_branch
        %204 = sbr.rel (%p202) target = $region20
      $region19: #{tpu_custom_call.1} parent=5 // pred_region
        // Predicated region
        $region21: #{tpu_custom_call.1} parent=19 // pred_check
          %p205 = pneg %p46
        $region22: #{tpu_custom_call.1} parent=19 // pred_check_branch
          %207 = sbr.rel (%p205) target = $region24
        $region23: #{tpu_custom_call.1} parent=19 // pred_region
          %p208 = scmp.lt.s32.totalorder %s21, 1
          %s209 = scalar_select %p208, %s21, 1
          %s210 = smul.addr %s209, 2
          %s211 = smul.addr %s210, 8
          %s212 = scalar_lea.vmem %s0, %s211
        $region24: #{tpu_custom_call.1} parent=19 // pred_fallthru
          _
        // Predicated region
        $region25: #{tpu_custom_call.1} parent=19 // pred_check
          %p213 = pneg %p72
        $region26: #{tpu_custom_call.1} parent=19 // pred_check_branch
          %215 = sbr.rel (%p213) target = $region28
        $region27: #{tpu_custom_call.1} parent=19 // pred_region
          %p216 = scmp.lt.s32.totalorder %s21, 1
          %s217 = scalar_select %p216, %s21, 1
          %s218 = smul.addr %s217, 2
          %s219 = smul.addr %s218, 8
          %s220 = scalar_lea.vmem %s1, %s219
        $region28: #{tpu_custom_call.1} parent=19 // pred_fallthru
          _
        // Predicated region
        $region29: #{tpu_custom_call.1} parent=19 // pred_check
          %p221 = pneg %p100
        $region30: #{tpu_custom_call.1} parent=19 // pred_check_branch
          %223 = sbr.rel (%p221) target = $region32
        $region31: #{tpu_custom_call.1} parent=19 // pred_region
          %s224 = smul.u32 2, %s22
          %p225 = scmp.lt.s32.totalorder %s21, 1
          %s226 = scalar_select %p225, %s21, 1
          %p227 = scmp.lt.s32.totalorder %s224, 1
          %s228 = scalar_select %p227, %s224, 1
          %s229 = smul.addr %s226, 2
          %s230 = sadd.s32 %s228, %s229
          %s231 = smul.addr %s230, 8
          %s232 = scalar_lea.vmem %s2, %s231
          %s233 = smul.u32 2, %s22
        $region32: #{tpu_custom_call.1} parent=19 // pred_fallthru
          _
        // Predicated region
        $region33: #{tpu_custom_call.1} parent=19 // pred_check
          %p234 = pneg %p128
        $region34: #{tpu_custom_call.1} parent=19 // pred_check_branch
          %236 = sbr.rel (%p234) target = $region36
        $region35: #{tpu_custom_call.1} parent=19 // pred_region
          %s237 = smul.u32 2, %s22
          %p238 = scmp.lt.s32.totalorder %s21, 1
          %s239 = scalar_select %p238, %s21, 1
          %p240 = scmp.lt.s32.totalorder %s237, 1
          %s241 = scalar_select %p240, %s237, 1
          %s242 = smul.addr %s239, 2
          %s243 = sadd.s32 %s241, %s242
          %s244 = smul.addr %s243, 8
          %s245 = scalar_lea.vmem %s3, %s244
          %s246 = smul.u32 2, %s22
        $region36: #{tpu_custom_call.1} parent=19 // pred_fallthru
          _
      $region20: #{tpu_custom_call.1} parent=5 // pred_fallthru
        _
      %p247 = scmp.le.s32.totalorder 1, %s14
      %p248 = scmp.lt.s32.totalorder %s14, 3
      %p249 = pnand %p247, %p248
      %p250 = pneg %p249
      // Predicated region
      $region37: #{tpu_custom_call.1} parent=5 // pred_check
        _
      $region38: #{tpu_custom_call.1} parent=5 // pred_check_branch
        %252 = sbr.rel (%p249) target = $region40
      $region39: #{tpu_custom_call.1} parent=5 // pred_region
        %s253 = ssub.s32 %s14, 1
        %p254 = scmp.lt.s32.totalorder %s23, 1
        %s255 = scalar_select %p254, %s23, 1
        %s256 = smul.addr %s255, 2
        %s257 = smul.addr %s256, 8
        %s258 = scalar_lea.vmem %s0, %s257
        %p259 = pneg %p52
        %p260 = pneg %p49
        %p261 = scmp.lt.s32.totalorder %s23, 1
        %s262 = scalar_select %p261, %s23, 1
        %s263 = smul.addr %s262, 2
        %s264 = smul.addr %s263, 8
        %s265 = scalar_lea.vmem %s1, %s264
        %p266 = pneg %p78
        %p267 = pneg %p75
        %s268 = smul.u32 2, %s24
        %p269 = scmp.lt.s32.totalorder %s23, 1
        %s270 = scalar_select %p269, %s23, 1
        %p271 = scmp.lt.s32.totalorder %s268, 1
        %s272 = scalar_select %p271, %s268, 1
        %s273 = smul.addr %s270, 2
        %s274 = sadd.s32 %s272, %s273
        %s275 = smul.addr %s274, 8
        %s276 = scalar_lea.vmem %s2, %s275
        %p277 = pneg %p106
        %p278 = pneg %p103
        %s279 = smul.u32 2, %s24
        %p280 = scmp.lt.s32.totalorder %s23, 1
        %s281 = scalar_select %p280, %s23, 1
        %p282 = scmp.lt.s32.totalorder %s279, 1
        %s283 = scalar_select %p282, %s279, 1
        %s284 = smul.addr %s281, 2
        %s285 = sadd.s32 %s283, %s284
        %s286 = smul.addr %s285, 8
        %s287 = scalar_lea.vmem %s3, %s286
        %p288 = pneg %p134
        %p289 = pneg %p131
        %p290 = pneg %p155
        %p291 = pneg %p152
        %p292 = pneg %p183
        %p293 = pneg %p180
        %s294 = sand.u32 %s170, 1
        %s295 = scalar_lea.sflag [#allocation3], %s294
        %s296 = sand.u32 %s170, 1
        %s297 = smul.addr %s296, 16
        %s298 = scalar_lea.vmem [#allocation2], %s297
        %p299 = scmp.lt.s32.totalorder %s23, 1
        %s300 = scalar_select %p299, %s23, 1
        %s301 = smul.addr %s300, 2
        %s302 = smul.addr %s301, 8
        %s303 = scalar_lea.vmem %s0, %s302
        %p304 = scmp.lt.s32.totalorder %s23, 1
        %s305 = scalar_select %p304, %s23, 1
        %s306 = smul.addr %s305, 2
        %s307 = smul.addr %s306, 8
        %s308 = scalar_lea.vmem %s1, %s307
        %s309 = smul.u32 2, %s24
        %p310 = scmp.lt.s32.totalorder %s23, 1
        %s311 = scalar_select %p310, %s23, 1
        %p312 = scmp.lt.s32.totalorder %s309, 1
        %s313 = scalar_select %p312, %s309, 1
        %s314 = smul.addr %s311, 2
        %s315 = sadd.s32 %s313, %s314
        %s316 = smul.addr %s315, 8
        %s317 = scalar_lea.vmem %s2, %s316
        %s318 = smul.u32 2, %s24
        %s319 = smul.u32 2, %s24
        %p320 = scmp.lt.s32.totalorder %s23, 1
        %s321 = scalar_select %p320, %s23, 1
        %p322 = scmp.lt.s32.totalorder %s319, 1
        %s323 = scalar_select %p322, %s319, 1
        %s324 = smul.addr %s321, 2
        %s325 = sadd.s32 %s323, %s324
        %s326 = smul.addr %s325, 8
        %s327 = scalar_lea.vmem %s3, %s326
        %s328 = smul.u32 2, %s24
        %s329 = smul.u32 2, %s24
        %v330 = vld [vmem:[%s303] sm:$0xff]
        %v331 = vld [vmem:[%s303 + $0x8] sm:$0xff]
        %v332 = vld [vmem:[%s308] sm:$0xff]
        %v333 = vld [vmem:[%s308 + $0x8] sm:$0xff]
        %v334 = vld [vmem:[%s317] sm:$0xff]
        %v335 = vld [vmem:[%s317 + $0x8] sm:$0xff]
        %v336 = vld [vmem:[%s327] sm:$0xff]
        %v337 = vld [vmem:[%s327 + $0x8] sm:$0xff]
        %v338 = vlaneseq
        %v339 = vand.u32 %v338, 127
        %340 = vset.pattern.permute.xlu0 0
        %341 = vperm.xlu0 %340, %v334
        %v342 = vpop.permute.xlu0 %341
        %343 = vset.pattern.permute.xlu0 0
        %344 = vperm.xlu0 %343, %v335
        %v345 = vpop.permute.xlu0 %344
        %vm346 = vcmp.eq.s32.totalorder %v342, %v339
        %vm347 = vcmp.eq.s32.totalorder %v345, %v339
        %v348 = vsel %vm346, 1, 0
        %v349 = vsel %vm347, 1, 0
        %v350 = vcvt.s32.f32 %v348
        %v351 = vcvt.s32.f32 %v349
        %352 = vset.pattern.permute.xlu0 0
        %353 = vperm.xlu0 %352, %v336
        %v354 = vpop.permute.xlu0 %353
        %355 = vset.pattern.permute.xlu0 0
        %356 = vperm.xlu0 %355, %v337
        %v357 = vpop.permute.xlu0 %356
        %vm358 = vcmp.eq.s32.totalorder %v354, %v339
        %vm359 = vcmp.eq.s32.totalorder %v357, %v339
        %v360 = vsel %vm358, 1, 0
        %v361 = vsel %vm359, 1, 0
        %v362 = vcvt.s32.f32 %v360
        %v363 = vcvt.s32.f32 %v361
        %vm364 = vcmask 130048
        %v366 = vsel %vm364, %v362, 0
        %v369 = vsel %vm364, %v363, 0
        %371 = vmatprep.subr.mxu0 0.0
        %372 = vmatpush1.msra.mxu0 %v332
        %373 = vmatprep.subr.mxu0 0.0
        %374 = vmatpush1.msra.mxu0 %v333
        %375 = vmatprep.subr.mxu0 0.0
        %376 = vmatpush1.msra.mxu0 0.0
        %377 = vmatprep.subr.mxu0 0.0
        %378 = vmatpush1.msra.mxu0 0.0
        %379 = vmatprep.subr.mxu0 0.0
        %380 = vmatpush1.msra.mxu0 0.0
        %381 = vmatprep.subr.mxu0 0.0
        %382 = vmatpush1.msra.mxu0 0.0
        %383 = vmatprep.subr.mxu0 0.0
        %384 = vmatpush1.msra.mxu0 0.0
        %385 = vmatprep.subr.mxu0 0.0
        %386 = vmatpush1.msra.mxu0 0.0
        %387 = vmatprep.subr.mxu0 0.0
        %388 = vmatpush1.msra.mxu0 0.0
        %389 = vmatprep.subr.mxu0 0.0
        %390 = vmatpush1.msra.mxu0 0.0
        %391 = vmatprep.subr.mxu0 0.0
        %392 = vmatpush1.msra.mxu0 0.0
        %393 = vmatprep.subr.mxu0 0.0
        %394 = vmatpush1.msra.mxu0 0.0
        %395 = vmatprep.subr.mxu0 0.0
        %396 = vmatpush1.msra.mxu0 0.0
        %397 = vmatprep.subr.mxu0 0.0
        %398 = vmatpush1.msra.mxu0 0.0
        %399 = vmatprep.subr.mxu0 0.0
        %400 = vmatpush1.msra.mxu0 0.0
        %401 = vmatprep.subr.mxu0 0.0
        %402 = vmatpush1.msra.mxu0 0.0
        %403 = vmatprep.subr.mxu0 0.0
        %404 = vmatpush1.msra.mxu0 0.0
        %405 = vmatprep.subr.mxu0 0.0
        %406 = vmatpush1.msra.mxu0 0.0
        %407 = vmatprep.subr.mxu0 0.0
        %408 = vmatpush1.msra.mxu0 0.0
        %409 = vmatprep.subr.mxu0 0.0
        %410 = vmatpush1.msra.mxu0 0.0
        %411 = vmatprep.subr.mxu0 0.0
        %412 = vmatpush1.msra.mxu0 0.0
        %413 = vmatprep.subr.mxu0 0.0
        %414 = vmatpush1.msra.mxu0 0.0
        %415 = vmatprep.subr.mxu0 0.0
        %416 = vmatpush1.msra.mxu0 0.0
        %417 = vmatprep.subr.mxu0 0.0
        %418 = vmatpush1.msra.mxu0 0.0
        %419 = vmatprep.subr.mxu0 0.0
        %420 = vmatpush1.msra.mxu0 0.0
        %421 = vmatprep.subr.mxu0 0.0
        %422 = vmatpush1.msra.mxu0 0.0
        %423 = vmatprep.subr.mxu0 0.0
        %424 = vmatpush1.msra.mxu0 0.0
        %425 = vmatprep.subr.mxu0 0.0
        %426 = vmatpush1.msra.mxu0 0.0
        %427 = vmatprep.subr.mxu0 0.0
        %428 = vmatpush1.msra.mxu0 0.0
        %429 = vmatprep.subr.mxu0 0.0
        %430 = vmatpush1.msra.mxu0 0.0
        %431 = vmatprep.subr.mxu0 0.0
        %432 = vmatpush1.msra.mxu0 0.0
        %433 = vmatprep.subr.mxu0 0.0
        %434 = vmatpush1.msra.mxu0 0.0
        %435 = vmatprep.mubr.f32.mxu0 0.0
        %436 = vmatmul.mubr.f32.gmra.mrb[0].mxu0 %v366
        %v437 = vpop.f32.mrb[0].mxu0
        %v438 = vadd.f32 0.0, %v437
        %v439 = vpop.f32.mrb[0].mxu0
        %440 = vmatprep.mubr.f32.mxu0 0.0
        %441 = vmatmul.mubr.f32.gmra.mrb[0].mxu0 %v369
        %v442 = vpop.f32.mrb[0].mxu0
        %v443 = vadd.f32 0.0, %v442
        %v444 = vpop.f32.mrb[0].mxu0
        %445 = vdwg.mxu0
        %v447 = vsel %vm364, %v350, 0
        %v450 = vsel %vm364, %v351, 0
        %452 = vmatprep.subr.mxu0 0.0
        %453 = vmatpush1.msra.mxu0 %v330
        %454 = vmatprep.subr.mxu0 0.0
        %455 = vmatpush1.msra.mxu0 %v331
        %456 = vmatprep.subr.mxu0 0.0
        %457 = vmatpush1.msra.mxu0 0.0
        %458 = vmatprep.subr.mxu0 0.0
        %459 = vmatpush1.msra.mxu0 0.0
        %460 = vmatprep.subr.mxu0 0.0
        %461 = vmatpush1.msra.mxu0 0.0
        %462 = vmatprep.subr.mxu0 0.0
        %463 = vmatpush1.msra.mxu0 0.0
        %464 = vmatprep.subr.mxu0 0.0
        %465 = vmatpush1.msra.mxu0 0.0
        %466 = vmatprep.subr.mxu0 0.0
        %467 = vmatpush1.msra.mxu0 0.0
        %468 = vmatprep.subr.mxu0 0.0
        %469 = vmatpush1.msra.mxu0 0.0
        %470 = vmatprep.subr.mxu0 0.0
        %471 = vmatpush1.msra.mxu0 0.0
        %472 = vmatprep.subr.mxu0 0.0
        %473 = vmatpush1.msra.mxu0 0.0
        %474 = vmatprep.subr.mxu0 0.0
        %475 = vmatpush1.msra.mxu0 0.0
        %476 = vmatprep.subr.mxu0 0.0
        %477 = vmatpush1.msra.mxu0 0.0
        %478 = vmatprep.subr.mxu0 0.0
        %479 = vmatpush1.msra.mxu0 0.0
        %480 = vmatprep.subr.mxu0 0.0
        %481 = vmatpush1.msra.mxu0 0.0
        %482 = vmatprep.subr.mxu0 0.0
        %483 = vmatpush1.msra.mxu0 0.0
        %484 = vmatprep.subr.mxu0 0.0
        %485 = vmatpush1.msra.mxu0 0.0
        %486 = vmatprep.subr.mxu0 0.0
        %487 = vmatpush1.msra.mxu0 0.0
        %488 = vmatprep.subr.mxu0 0.0
        %489 = vmatpush1.msra.mxu0 0.0
        %490 = vmatprep.subr.mxu0 0.0
        %491 = vmatpush1.msra.mxu0 0.0
        %492 = vmatprep.subr.mxu0 0.0
        %493 = vmatpush1.msra.mxu0 0.0
        %494 = vmatprep.subr.mxu0 0.0
        %495 = vmatpush1.msra.mxu0 0.0
        %496 = vmatprep.subr.mxu0 0.0
        %497 = vmatpush1.msra.mxu0 0.0
        %498 = vmatprep.subr.mxu0 0.0
        %499 = vmatpush1.msra.mxu0 0.0
        %500 = vmatprep.subr.mxu0 0.0
        %501 = vmatpush1.msra.mxu0 0.0
        %502 = vmatprep.subr.mxu0 0.0
        %503 = vmatpush1.msra.mxu0 0.0
        %504 = vmatprep.subr.mxu0 0.0
        %505 = vmatpush1.msra.mxu0 0.0
        %506 = vmatprep.subr.mxu0 0.0
        %507 = vmatpush1.msra.mxu0 0.0
        %508 = vmatprep.subr.mxu0 0.0
        %509 = vmatpush1.msra.mxu0 0.0
        %510 = vmatprep.subr.mxu0 0.0
        %511 = vmatpush1.msra.mxu0 0.0
        %512 = vmatprep.subr.mxu0 0.0
        %513 = vmatpush1.msra.mxu0 0.0
        %514 = vmatprep.subr.mxu0 0.0
        %515 = vmatpush1.msra.mxu0 0.0
        %516 = vmatprep.mubr.f32.mxu0 0.0
        %517 = vmatmul.mubr.f32.gmra.mrb[0].mxu0 %v447
        %v518 = vpop.f32.mrb[0].mxu0
        %v519 = vadd.f32 %v438, %v518
        %v520 = vpop.f32.mrb[0].mxu0
        %521 = vmatprep.mubr.f32.mxu0 0.0
        %522 = vmatmul.mubr.f32.gmra.mrb[0].mxu0 %v450
        %v523 = vpop.f32.mrb[0].mxu0
        %v524 = vadd.f32 %v443, %v523
        %v525 = vpop.f32.mrb[0].mxu0
        %526 = vdwg.mxu0
        %527 = vset.pattern.permute.xlu0 1
        %528 = vperm.xlu0 %527, %v334
        %v529 = vpop.permute.xlu0 %528
        %530 = vset.pattern.permute.xlu0 1
        %531 = vperm.xlu0 %530, %v335
        %v532 = vpop.permute.xlu0 %531
        %vm533 = vcmp.eq.s32.totalorder %v529, %v339
        %vm534 = vcmp.eq.s32.totalorder %v532, %v339
        %v535 = vsel %vm533, 1, 0
        %v536 = vsel %vm534, 1, 0
        %v537 = vcvt.s32.f32 %v535
        %v538 = vcvt.s32.f32 %v536
        %539 = vset.pattern.permute.xlu0 1
        %540 = vperm.xlu0 %539, %v336
        %v541 = vpop.permute.xlu0 %540
        %542 = vset.pattern.permute.xlu0 1
        %543 = vperm.xlu0 %542, %v337
        %v544 = vpop.permute.xlu0 %543
        %vm545 = vcmp.eq.s32.totalorder %v541, %v339
        %vm546 = vcmp.eq.s32.totalorder %v544, %v339
        %v547 = vsel %vm545, 1, 0
        %v548 = vsel %vm546, 1, 0
        %v549 = vcvt.s32.f32 %v547
        %v550 = vcvt.s32.f32 %v548
        %v552 = vsel %vm364, %v549, 0
        %v555 = vsel %vm364, %v550, 0
        %557 = vmatprep.subr.mxu0 0.0
        %558 = vmatpush1.msra.mxu0 %v332
        %559 = vmatprep.subr.mxu0 0.0
        %560 = vmatpush1.msra.mxu0 %v333
        %561 = vmatprep.subr.mxu0 0.0
        %562 = vmatpush1.msra.mxu0 0.0
        %563 = vmatprep.subr.mxu0 0.0
        %564 = vmatpush1.msra.mxu0 0.0
        %565 = vmatprep.subr.mxu0 0.0
        %566 = vmatpush1.msra.mxu0 0.0
        %567 = vmatprep.subr.mxu0 0.0
        %568 = vmatpush1.msra.mxu0 0.0
        %569 = vmatprep.subr.mxu0 0.0
        %570 = vmatpush1.msra.mxu0 0.0
        %571 = vmatprep.subr.mxu0 0.0
        %572 = vmatpush1.msra.mxu0 0.0
        %573 = vmatprep.subr.mxu0 0.0
        %574 = vmatpush1.msra.mxu0 0.0
        %575 = vmatprep.subr.mxu0 0.0
        %576 = vmatpush1.msra.mxu0 0.0
        %577 = vmatprep.subr.mxu0 0.0
        %578 = vmatpush1.msra.mxu0 0.0
        %579 = vmatprep.subr.mxu0 0.0
        %580 = vmatpush1.msra.mxu0 0.0
        %581 = vmatprep.subr.mxu0 0.0
        %582 = vmatpush1.msra.mxu0 0.0
        %583 = vmatprep.subr.mxu0 0.0
        %584 = vmatpush1.msra.mxu0 0.0
        %585 = vmatprep.subr.mxu0 0.0
        %586 = vmatpush1.msra.mxu0 0.0
        %587 = vmatprep.subr.mxu0 0.0
        %588 = vmatpush1.msra.mxu0 0.0
        %589 = vmatprep.subr.mxu0 0.0
        %590 = vmatpush1.msra.mxu0 0.0
        %591 = vmatprep.subr.mxu0 0.0
        %592 = vmatpush1.msra.mxu0 0.0
        %593 = vmatprep.subr.mxu0 0.0
        %594 = vmatpush1.msra.mxu0 0.0
        %595 = vmatprep.subr.mxu0 0.0
        %596 = vmatpush1.msra.mxu0 0.0
        %597 = vmatprep.subr.mxu0 0.0
        %598 = vmatpush1.msra.mxu0 0.0
        %599 = vmatprep.subr.mxu0 0.0
        %600 = vmatpush1.msra.mxu0 0.0
        %601 = vmatprep.subr.mxu0 0.0
        %602 = vmatpush1.msra.mxu0 0.0
        %603 = vmatprep.subr.mxu0 0.0
        %604 = vmatpush1.msra.mxu0 0.0
        %605 = vmatprep.subr.mxu0 0.0
        %606 = vmatpush1.msra.mxu0 0.0
        %607 = vmatprep.subr.mxu0 0.0
        %608 = vmatpush1.msra.mxu0 0.0
        %609 = vmatprep.subr.mxu0 0.0
        %610 = vmatpush1.msra.mxu0 0.0
        %611 = vmatprep.subr.mxu0 0.0
        %612 = vmatpush1.msra.mxu0 0.0
        %613 = vmatprep.subr.mxu0 0.0
        %614 = vmatpush1.msra.mxu0 0.0
        %615 = vmatprep.subr.mxu0 0.0
        %616 = vmatpush1.msra.mxu0 0.0
        %617 = vmatprep.subr.mxu0 0.0
        %618 = vmatpush1.msra.mxu0 0.0
        %619 = vmatprep.subr.mxu0 0.0
        %620 = vmatpush1.msra.mxu0 0.0
        %621 = vmatprep.mubr.f32.mxu0 0.0
        %622 = vmatmul.mubr.f32.gmra.mrb[0].mxu0 %v552
        %v623 = vpop.f32.mrb[0].mxu0
        %v624 = vadd.f32 0.0, %v623
        %v625 = vpop.f32.mrb[0].mxu0
        %626 = vmatprep.mubr.f32.mxu0 0.0
        %627 = vmatmul.mubr.f32.gmra.mrb[0].mxu0 %v555
        %v628 = vpop.f32.mrb[0].mxu0
        %v629 = vadd.f32 0.0, %v628
        %v630 = vpop.f32.mrb[0].mxu0
        %631 = vdwg.mxu0
        %v633 = vsel %vm364, %v537, 0
        %v636 = vsel %vm364, %v538, 0
        %638 = vmatprep.subr.mxu0 0.0
        %639 = vmatpush1.msra.mxu0 %v330
        %640 = vmatprep.subr.mxu0 0.0
        %641 = vmatpush1.msra.mxu0 %v331
        %642 = vmatprep.subr.mxu0 0.0
        %643 = vmatpush1.msra.mxu0 0.0
        %644 = vmatprep.subr.mxu0 0.0
        %645 = vmatpush1.msra.mxu0 0.0
        %646 = vmatprep.subr.mxu0 0.0
        %647 = vmatpush1.msra.mxu0 0.0
        %648 = vmatprep.subr.mxu0 0.0
        %649 = vmatpush1.msra.mxu0 0.0
        %650 = vmatprep.subr.mxu0 0.0
        %651 = vmatpush1.msra.mxu0 0.0
        %652 = vmatprep.subr.mxu0 0.0
        %653 = vmatpush1.msra.mxu0 0.0
        %654 = vmatprep.subr.mxu0 0.0
        %655 = vmatpush1.msra.mxu0 0.0
        %656 = vmatprep.subr.mxu0 0.0
        %657 = vmatpush1.msra.mxu0 0.0
        %658 = vmatprep.subr.mxu0 0.0
        %659 = vmatpush1.msra.mxu0 0.0
        %660 = vmatprep.subr.mxu0 0.0
        %661 = vmatpush1.msra.mxu0 0.0
        %662 = vmatprep.subr.mxu0 0.0
        %663 = vmatpush1.msra.mxu0 0.0
        %664 = vmatprep.subr.mxu0 0.0
        %665 = vmatpush1.msra.mxu0 0.0
        %666 = vmatprep.subr.mxu0 0.0
        %667 = vmatpush1.msra.mxu0 0.0
        %668 = vmatprep.subr.mxu0 0.0
        %669 = vmatpush1.msra.mxu0 0.0
        %670 = vmatprep.subr.mxu0 0.0
        %671 = vmatpush1.msra.mxu0 0.0
        %672 = vmatprep.subr.mxu0 0.0
        %673 = vmatpush1.msra.mxu0 0.0
        %674 = vmatprep.subr.mxu0 0.0
        %675 = vmatpush1.msra.mxu0 0.0
        %676 = vmatprep.subr.mxu0 0.0
        %677 = vmatpush1.msra.mxu0 0.0
        %678 = vmatprep.subr.mxu0 0.0
        %679 = vmatpush1.msra.mxu0 0.0
        %680 = vmatprep.subr.mxu0 0.0
        %681 = vmatpush1.msra.mxu0 0.0
        %682 = vmatprep.subr.mxu0 0.0
        %683 = vmatpush1.msra.mxu0 0.0
        %684 = vmatprep.subr.mxu0 0.0
        %685 = vmatpush1.msra.mxu0 0.0
        %686 = vmatprep.subr.mxu0 0.0
        %687 = vmatpush1.msra.mxu0 0.0
        %688 = vmatprep.subr.mxu0 0.0
        %689 = vmatpush1.msra.mxu0 0.0
        %690 = vmatprep.subr.mxu0 0.0
        %691 = vmatpush1.msra.mxu0 0.0
        %692 = vmatprep.subr.mxu0 0.0
        %693 = vmatpush1.msra.mxu0 0.0
        %694 = vmatprep.subr.mxu0 0.0
        %695 = vmatpush1.msra.mxu0 0.0
        %696 = vmatprep.subr.mxu0 0.0
        %697 = vmatpush1.msra.mxu0 0.0
        %698 = vmatprep.subr.mxu0 0.0
        %699 = vmatpush1.msra.mxu0 0.0
        %700 = vmatprep.subr.mxu0 0.0
        %701 = vmatpush1.msra.mxu0 0.0
        %702 = vmatprep.mubr.f32.mxu0 0.0
        %703 = vmatmul.mubr.f32.gmra.mrb[0].mxu0 %v633
        %v704 = vpop.f32.mrb[0].mxu0
        %v705 = vadd.f32 %v624, %v704
        %v706 = vpop.f32.mrb[0].mxu0
        %707 = vmatprep.mubr.f32.mxu0 0.0
        %708 = vmatmul.mubr.f32.gmra.mrb[0].mxu0 %v636
        %v709 = vpop.f32.mrb[0].mxu0
        %v710 = vadd.f32 %v629, %v709
        %v711 = vpop.f32.mrb[0].mxu0
        %712 = vdwg.mxu0
        %v713 = vmax.f32 %v519, %v705
        %v714 = vmax.f32 %v524, %v710
        %715 = vset.pattern.permute.xlu0 2
        %716 = vperm.xlu0 %715, %v334
        %v717 = vpop.permute.xlu0 %716
        %718 = vset.pattern.permute.xlu0 2
        %719 = vperm.xlu0 %718, %v335
        %v720 = vpop.permute.xlu0 %719
        %vm721 = vcmp.eq.s32.totalorder %v717, %v339
        %vm722 = vcmp.eq.s32.totalorder %v720, %v339
        %v723 = vsel %vm721, 1, 0
        %v724 = vsel %vm722, 1, 0
        %v725 = vcvt.s32.f32 %v723
        %v726 = vcvt.s32.f32 %v724
        %727 = vset.pattern.permute.xlu0 2
        %728 = vperm.xlu0 %727, %v336
        %v729 = vpop.permute.xlu0 %728
        %730 = vset.pattern.permute.xlu0 2
        %731 = vperm.xlu0 %730, %v337
        %v732 = vpop.permute.xlu0 %731
        %vm733 = vcmp.eq.s32.totalorder %v729, %v339
        %vm734 = vcmp.eq.s32.totalorder %v732, %v339
        %v735 = vsel %vm733, 1, 0
        %v736 = vsel %vm734, 1, 0
        %v737 = vcvt.s32.f32 %v735
        %v738 = vcvt.s32.f32 %v736
        %v740 = vsel %vm364, %v737, 0
        %v743 = vsel %vm364, %v738, 0
        %745 = vmatprep.subr.mxu0 0.0
        %746 = vmatpush1.msra.mxu0 %v332
        %747 = vmatprep.subr.mxu0 0.0
        %748 = vmatpush1.msra.mxu0 %v333
        %749 = vmatprep.subr.mxu0 0.0
        %750 = vmatpush1.msra.mxu0 0.0
        %751 = vmatprep.subr.mxu0 0.0
        %752 = vmatpush1.msra.mxu0 0.0
        %753 = vmatprep.subr.mxu0 0.0
        %754 = vmatpush1.msra.mxu0 0.0
        %755 = vmatprep.subr.mxu0 0.0
        %756 = vmatpush1.msra.mxu0 0.0
        %757 = vmatprep.subr.mxu0 0.0
        %758 = vmatpush1.msra.mxu0 0.0
        %759 = vmatprep.subr.mxu0 0.0
        %760 = vmatpush1.msra.mxu0 0.0
        %761 = vmatprep.subr.mxu0 0.0
        %762 = vmatpush1.msra.mxu0 0.0
        %763 = vmatprep.subr.mxu0 0.0
        %764 = vmatpush1.msra.mxu0 0.0
        %765 = vmatprep.subr.mxu0 0.0
        %766 = vmatpush1.msra.mxu0 0.0
        %767 = vmatprep.subr.mxu0 0.0
        %768 = vmatpush1.msra.mxu0 0.0
        %769 = vmatprep.subr.mxu0 0.0
        %770 = vmatpush1.msra.mxu0 0.0
        %771 = vmatprep.subr.mxu0 0.0
        %772 = vmatpush1.msra.mxu0 0.0
        %773 = vmatprep.subr.mxu0 0.0
        %774 = vmatpush1.msra.mxu0 0.0
        %775 = vmatprep.subr.mxu0 0.0
        %776 = vmatpush1.msra.mxu0 0.0
        %777 = vmatprep.subr.mxu0 0.0
        %778 = vmatpush1.msra.mxu0 0.0
        %779 = vmatprep.subr.mxu0 0.0
        %780 = vmatpush1.msra.mxu0 0.0
        %781 = vmatprep.subr.mxu0 0.0
        %782 = vmatpush1.msra.mxu0 0.0
        %783 = vmatprep.subr.mxu0 0.0
        %784 = vmatpush1.msra.mxu0 0.0
        %785 = vmatprep.subr.mxu0 0.0
        %786 = vmatpush1.msra.mxu0 0.0
        %787 = vmatprep.subr.mxu0 0.0
        %788 = vmatpush1.msra.mxu0 0.0
        %789 = vmatprep.subr.mxu0 0.0
        %790 = vmatpush1.msra.mxu0 0.0
        %791 = vmatprep.subr.mxu0 0.0
        %792 = vmatpush1.msra.mxu0 0.0
        %793 = vmatprep.subr.mxu0 0.0
        %794 = vmatpush1.msra.mxu0 0.0
        %795 = vmatprep.subr.mxu0 0.0
        %796 = vmatpush1.msra.mxu0 0.0
        %797 = vmatprep.subr.mxu0 0.0
        %798 = vmatpush1.msra.mxu0 0.0
        %799 = vmatprep.subr.mxu0 0.0
        %800 = vmatpush1.msra.mxu0 0.0
        %801 = vmatprep.subr.mxu0 0.0
        %802 = vmatpush1.msra.mxu0 0.0
        %803 = vmatprep.subr.mxu0 0.0
        %804 = vmatpush1.msra.mxu0 0.0
        %805 = vmatprep.subr.mxu0 0.0
        %806 = vmatpush1.msra.mxu0 0.0
        %807 = vmatprep.subr.mxu0 0.0
        %808 = vmatpush1.msra.mxu0 0.0
        %809 = vmatprep.mubr.f32.mxu0 0.0
        %810 = vmatmul.mubr.f32.gmra.mrb[0].mxu0 %v740
        %v811 = vpop.f32.mrb[0].mxu0
        %v812 = vadd.f32 0.0, %v811
        %v813 = vpop.f32.mrb[0].mxu0
        %814 = vmatprep.mubr.f32.mxu0 0.0
        %815 = vmatmul.mubr.f32.gmra.mrb[0].mxu0 %v743
        %v816 = vpop.f32.mrb[0].mxu0
        %v817 = vadd.f32 0.0, %v816
        %v818 = vpop.f32.mrb[0].mxu0
        %819 = vdwg.mxu0
        %v821 = vsel %vm364, %v725, 0
        %v824 = vsel %vm364, %v726, 0
        %826 = vmatprep.subr.mxu0 0.0
        %827 = vmatpush1.msra.mxu0 %v330
        %828 = vmatprep.subr.mxu0 0.0
        %829 = vmatpush1.msra.mxu0 %v331
        %830 = vmatprep.subr.mxu0 0.0
        %831 = vmatpush1.msra.mxu0 0.0
        %832 = vmatprep.subr.mxu0 0.0
        %833 = vmatpush1.msra.mxu0 0.0
        %834 = vmatprep.subr.mxu0 0.0
        %835 = vmatpush1.msra.mxu0 0.0
        %836 = vmatprep.subr.mxu0 0.0
        %837 = vmatpush1.msra.mxu0 0.0
        %838 = vmatprep.subr.mxu0 0.0
        %839 = vmatpush1.msra.mxu0 0.0
        %840 = vmatprep.subr.mxu0 0.0
        %841 = vmatpush1.msra.mxu0 0.0
        %842 = vmatprep.subr.mxu0 0.0
        %843 = vmatpush1.msra.mxu0 0.0
        %844 = vmatprep.subr.mxu0 0.0
        %845 = vmatpush1.msra.mxu0 0.0
        %846 = vmatprep.subr.mxu0 0.0
        %847 = vmatpush1.msra.mxu0 0.0
        %848 = vmatprep.subr.mxu0 0.0
        %849 = vmatpush1.msra.mxu0 0.0
        %850 = vmatprep.subr.mxu0 0.0
        %851 = vmatpush1.msra.mxu0 0.0
        %852 = vmatprep.subr.mxu0 0.0
        %853 = vmatpush1.msra.mxu0 0.0
        %854 = vmatprep.subr.mxu0 0.0
        %855 = vmatpush1.msra.mxu0 0.0
        %856 = vmatprep.subr.mxu0 0.0
        %857 = vmatpush1.msra.mxu0 0.0
        %858 = vmatprep.subr.mxu0 0.0
        %859 = vmatpush1.msra.mxu0 0.0
        %860 = vmatprep.subr.mxu0 0.0
        %861 = vmatpush1.msra.mxu0 0.0
        %862 = vmatprep.subr.mxu0 0.0
        %863 = vmatpush1.msra.mxu0 0.0
        %864 = vmatprep.subr.mxu0 0.0
        %865 = vmatpush1.msra.mxu0 0.0
        %866 = vmatprep.subr.mxu0 0.0
        %867 = vmatpush1.msra.mxu0 0.0
        %868 = vmatprep.subr.mxu0 0.0
        %869 = vmatpush1.msra.mxu0 0.0
        %870 = vmatprep.subr.mxu0 0.0
        %871 = vmatpush1.msra.mxu0 0.0
        %872 = vmatprep.subr.mxu0 0.0
        %873 = vmatpush1.msra.mxu0 0.0
        %874 = vmatprep.subr.mxu0 0.0
        %875 = vmatpush1.msra.mxu0 0.0
        %876 = vmatprep.subr.mxu0 0.0
        %877 = vmatpush1.msra.mxu0 0.0
        %878 = vmatprep.subr.mxu0 0.0
        %879 = vmatpush1.msra.mxu0 0.0
        %880 = vmatprep.subr.mxu0 0.0
        %881 = vmatpush1.msra.mxu0 0.0
        %882 = vmatprep.subr.mxu0 0.0
        %883 = vmatpush1.msra.mxu0 0.0
        %884 = vmatprep.subr.mxu0 0.0
        %885 = vmatpush1.msra.mxu0 0.0
        %886 = vmatprep.subr.mxu0 0.0
        %887 = vmatpush1.msra.mxu0 0.0
        %888 = vmatprep.subr.mxu0 0.0
        %889 = vmatpush1.msra.mxu0 0.0
        %890 = vmatprep.mubr.f32.mxu0 0.0
        %891 = vmatmul.mubr.f32.gmra.mrb[0].mxu0 %v821
        %v892 = vpop.f32.mrb[0].mxu0
        %v893 = vadd.f32 %v812, %v892
        %v894 = vpop.f32.mrb[0].mxu0
        %895 = vmatprep.mubr.f32.mxu0 0.0
        %896 = vmatmul.mubr.f32.gmra.mrb[0].mxu0 %v824
        %v897 = vpop.f32.mrb[0].mxu0
        %v898 = vadd.f32 %v817, %v897
        %v899 = vpop.f32.mrb[0].mxu0
        %900 = vdwg.mxu0
        %v901 = vmax.f32 %v713, %v893
        %v902 = vmax.f32 %v714, %v898
        %903 = vset.pattern.permute.xlu0 3
        %904 = vperm.xlu0 %903, %v334
        %v905 = vpop.permute.xlu0 %904
        %906 = vset.pattern.permute.xlu0 3
        %907 = vperm.xlu0 %906, %v335
        %v908 = vpop.permute.xlu0 %907
        %vm909 = vcmp.eq.s32.totalorder %v905, %v339
        %vm910 = vcmp.eq.s32.totalorder %v908, %v339
        %v911 = vsel %vm909, 1, 0
        %v912 = vsel %vm910, 1, 0
        %v913 = vcvt.s32.f32 %v911
        %v914 = vcvt.s32.f32 %v912
        %915 = vset.pattern.permute.xlu0 3
        %916 = vperm.xlu0 %915, %v336
        %v917 = vpop.permute.xlu0 %916
        %918 = vset.pattern.permute.xlu0 3
        %919 = vperm.xlu0 %918, %v337
        %v920 = vpop.permute.xlu0 %919
        %vm921 = vcmp.eq.s32.totalorder %v917, %v339
        %vm922 = vcmp.eq.s32.totalorder %v920, %v339
        %v923 = vsel %vm921, 1, 0
        %v924 = vsel %vm922, 1, 0
        %v925 = vcvt.s32.f32 %v923
        %v926 = vcvt.s32.f32 %v924
        %v928 = vsel %vm364, %v925, 0
        %v931 = vsel %vm364, %v926, 0
        %933 = vmatprep.subr.mxu0 0.0
        %934 = vmatpush1.msra.mxu0 %v332
        %935 = vmatprep.subr.mxu0 0.0
        %936 = vmatpush1.msra.mxu0 %v333
        %937 = vmatprep.subr.mxu0 0.0
        %938 = vmatpush1.msra.mxu0 0.0
        %939 = vmatprep.subr.mxu0 0.0
        %940 = vmatpush1.msra.mxu0 0.0
        %941 = vmatprep.subr.mxu0 0.0
        %942 = vmatpush1.msra.mxu0 0.0
        %943 = vmatprep.subr.mxu0 0.0
        %944 = vmatpush1.msra.mxu0 0.0
        %945 = vmatprep.subr.mxu0 0.0
        %946 = vmatpush1.msra.mxu0 0.0
        %947 = vmatprep.subr.mxu0 0.0
        %948 = vmatpush1.msra.mxu0 0.0
        %949 = vmatprep.subr.mxu0 0.0
        %950 = vmatpush1.msra.mxu0 0.0
        %951 = vmatprep.subr.mxu0 0.0
        %952 = vmatpush1.msra.mxu0 0.0
        %953 = vmatprep.subr.mxu0 0.0
        %954 = vmatpush1.msra.mxu0 0.0
        %955 = vmatprep.subr.mxu0 0.0
        %956 = vmatpush1.msra.mxu0 0.0
        %957 = vmatprep.subr.mxu0 0.0
        %958 = vmatpush1.msra.mxu0 0.0
        %959 = vmatprep.subr.mxu0 0.0
        %960 = vmatpush1.msra.mxu0 0.0
        %961 = vmatprep.subr.mxu0 0.0
        %962 = vmatpush1.msra.mxu0 0.0
        %963 = vmatprep.subr.mxu0 0.0
        %964 = vmatpush1.msra.mxu0 0.0
        %965 = vmatprep.subr.mxu0 0.0
        %966 = vmatpush1.msra.mxu0 0.0
        %967 = vmatprep.subr.mxu0 0.0
        %968 = vmatpush1.msra.mxu0 0.0
        %969 = vmatprep.subr.mxu0 0.0
        %970 = vmatpush1.msra.mxu0 0.0
        %971 = vmatprep.subr.mxu0 0.0
        %972 = vmatpush1.msra.mxu0 0.0
        %973 = vmatprep.subr.mxu0 0.0
        %974 = vmatpush1.msra.mxu0 0.0
        %975 = vmatprep.subr.mxu0 0.0
        %976 = vmatpush1.msra.mxu0 0.0
        %977 = vmatprep.subr.mxu0 0.0
        %978 = vmatpush1.msra.mxu0 0.0
        %979 = vmatprep.subr.mxu0 0.0
        %980 = vmatpush1.msra.mxu0 0.0
        %981 = vmatprep.subr.mxu0 0.0
        %982 = vmatpush1.msra.mxu0 0.0
        %983 = vmatprep.subr.mxu0 0.0
        %984 = vmatpush1.msra.mxu0 0.0
        %985 = vmatprep.subr.mxu0 0.0
        %986 = vmatpush1.msra.mxu0 0.0
        %987 = vmatprep.subr.mxu0 0.0
        %988 = vmatpush1.msra.mxu0 0.0
        %989 = vmatprep.subr.mxu0 0.0
        %990 = vmatpush1.msra.mxu0 0.0
        %991 = vmatprep.subr.mxu0 0.0
        %992 = vmatpush1.msra.mxu0 0.0
        %993 = vmatprep.subr.mxu0 0.0
        %994 = vmatpush1.msra.mxu0 0.0
        %995 = vmatprep.subr.mxu0 0.0
        %996 = vmatpush1.msra.mxu0 0.0
        %997 = vmatprep.mubr.f32.mxu0 0.0
        %998 = vmatmul.mubr.f32.gmra.mrb[0].mxu0 %v928
        %v999 = vpop.f32.mrb[0].mxu0
        %v1000 = vadd.f32 0.0, %v999
        %v1001 = vpop.f32.mrb[0].mxu0
        %1002 = vmatprep.mubr.f32.mxu0 0.0
        %1003 = vmatmul.mubr.f32.gmra.mrb[0].mxu0 %v931
        %v1004 = vpop.f32.mrb[0].mxu0
        %v1005 = vadd.f32 0.0, %v1004
        %v1006 = vpop.f32.mrb[0].mxu0
        %1007 = vdwg.mxu0
        %v1009 = vsel %vm364, %v913, 0
        %v1012 = vsel %vm364, %v914, 0
        %1014 = vmatprep.subr.mxu0 0.0
        %1015 = vmatpush1.msra.mxu0 %v330
        %1016 = vmatprep.subr.mxu0 0.0
        %1017 = vmatpush1.msra.mxu0 %v331
        %1018 = vmatprep.subr.mxu0 0.0
        %1019 = vmatpush1.msra.mxu0 0.0
        %1020 = vmatprep.subr.mxu0 0.0
        %1021 = vmatpush1.msra.mxu0 0.0
        %1022 = vmatprep.subr.mxu0 0.0
        %1023 = vmatpush1.msra.mxu0 0.0
        %1024 = vmatprep.subr.mxu0 0.0
        %1025 = vmatpush1.msra.mxu0 0.0
        %1026 = vmatprep.subr.mxu0 0.0
        %1027 = vmatpush1.msra.mxu0 0.0
        %1028 = vmatprep.subr.mxu0 0.0
        %1029 = vmatpush1.msra.mxu0 0.0
        %1030 = vmatprep.subr.mxu0 0.0
        %1031 = vmatpush1.msra.mxu0 0.0
        %1032 = vmatprep.subr.mxu0 0.0
        %1033 = vmatpush1.msra.mxu0 0.0
        %1034 = vmatprep.subr.mxu0 0.0
        %1035 = vmatpush1.msra.mxu0 0.0
        %1036 = vmatprep.subr.mxu0 0.0
        %1037 = vmatpush1.msra.mxu0 0.0
        %1038 = vmatprep.subr.mxu0 0.0
        %1039 = vmatpush1.msra.mxu0 0.0
        %1040 = vmatprep.subr.mxu0 0.0
        %1041 = vmatpush1.msra.mxu0 0.0
        %1042 = vmatprep.subr.mxu0 0.0
        %1043 = vmatpush1.msra.mxu0 0.0
        %1044 = vmatprep.subr.mxu0 0.0
        %1045 = vmatpush1.msra.mxu0 0.0
        %1046 = vmatprep.subr.mxu0 0.0
        %1047 = vmatpush1.msra.mxu0 0.0
        %1048 = vmatprep.subr.mxu0 0.0
        %1049 = vmatpush1.msra.mxu0 0.0
        %1050 = vmatprep.subr.mxu0 0.0
        %1051 = vmatpush1.msra.mxu0 0.0
        %1052 = vmatprep.subr.mxu0 0.0
        %1053 = vmatpush1.msra.mxu0 0.0
        %1054 = vmatprep.subr.mxu0 0.0
        %1055 = vmatpush1.msra.mxu0 0.0
        %1056 = vmatprep.subr.mxu0 0.0
        %1057 = vmatpush1.msra.mxu0 0.0
        %1058 = vmatprep.subr.mxu0 0.0
        %1059 = vmatpush1.msra.mxu0 0.0
        %1060 = vmatprep.subr.mxu0 0.0
        %1061 = vmatpush1.msra.mxu0 0.0
        %1062 = vmatprep.subr.mxu0 0.0
        %1063 = vmatpush1.msra.mxu0 0.0
        %1064 = vmatprep.subr.mxu0 0.0
        %1065 = vmatpush1.msra.mxu0 0.0
        %1066 = vmatprep.subr.mxu0 0.0
        %1067 = vmatpush1.msra.mxu0 0.0
        %1068 = vmatprep.subr.mxu0 0.0
        %1069 = vmatpush1.msra.mxu0 0.0
        %1070 = vmatprep.subr.mxu0 0.0
        %1071 = vmatpush1.msra.mxu0 0.0
        %1072 = vmatprep.subr.mxu0 0.0
        %1073 = vmatpush1.msra.mxu0 0.0
        %1074 = vmatprep.subr.mxu0 0.0
        %1075 = vmatpush1.msra.mxu0 0.0
        %1076 = vmatprep.subr.mxu0 0.0
        %1077 = vmatpush1.msra.mxu0 0.0
        %1078 = vmatprep.mubr.f32.mxu0 0.0
        %1079 = vmatmul.mubr.f32.gmra.mrb[0].mxu0 %v1009
        %v1080 = vpop.f32.mrb[0].mxu0
        %v1081 = vadd.f32 %v1000, %v1080
        %v1082 = vpop.f32.mrb[0].mxu0
        %1083 = vmatprep.mubr.f32.mxu0 0.0
        %1084 = vmatmul.mubr.f32.gmra.mrb[0].mxu0 %v1012
        %v1085 = vpop.f32.mrb[0].mxu0
        %v1086 = vadd.f32 %v1005, %v1085
        %v1087 = vpop.f32.mrb[0].mxu0
        %1088 = vdwg.mxu0
        %v1089 = vmax.f32 %v901, %v1081
        %v1090 = vmax.f32 %v902, %v1086
        %1091 = vset.pattern.permute.xlu0 4
        %1092 = vperm.xlu0 %1091, %v334
        %v1093 = vpop.permute.xlu0 %1092
        %1094 = vset.pattern.permute.xlu0 4
        %1095 = vperm.xlu0 %1094, %v335
        %v1096 = vpop.permute.xlu0 %1095
        %vm1097 = vcmp.eq.s32.totalorder %v1093, %v339
        %vm1098 = vcmp.eq.s32.totalorder %v1096, %v339
        %v1099 = vsel %vm1097, 1, 0
        %v1100 = vsel %vm1098, 1, 0
        %v1101 = vcvt.s32.f32 %v1099
        %v1102 = vcvt.s32.f32 %v1100
        %1103 = vset.pattern.permute.xlu0 4
        %1104 = vperm.xlu0 %1103, %v336
        %v1105 = vpop.permute.xlu0 %1104
        %1106 = vset.pattern.permute.xlu0 4
        %1107 = vperm.xlu0 %1106, %v337
        %v1108 = vpop.permute.xlu0 %1107
        %vm1109 = vcmp.eq.s32.totalorder %v1105, %v339
        %vm1110 = vcmp.eq.s32.totalorder %v1108, %v339
        %v1111 = vsel %vm1109, 1, 0
        %v1112 = vsel %vm1110, 1, 0
        %v1113 = vcvt.s32.f32 %v1111
        %v1114 = vcvt.s32.f32 %v1112
        %v1116 = vsel %vm364, %v1113, 0
        %v1119 = vsel %vm364, %v1114, 0
        %1121 = vmatprep.subr.mxu0 0.0
        %1122 = vmatpush1.msra.mxu0 %v332
        %1123 = vmatprep.subr.mxu0 0.0
        %1124 = vmatpush1.msra.mxu0 %v333
        %1125 = vmatprep.subr.mxu0 0.0
        %1126 = vmatpush1.msra.mxu0 0.0
        %1127 = vmatprep.subr.mxu0 0.0
        %1128 = vmatpush1.msra.mxu0 0.0
        %1129 = vmatprep.subr.mxu0 0.0
        %1130 = vmatpush1.msra.mxu0 0.0
        %1131 = vmatprep.subr.mxu0 0.0
        %1132 = vmatpush1.msra.mxu0 0.0
        %1133 = vmatprep.subr.mxu0 0.0
        %1134 = vmatpush1.msra.mxu0 0.0
        %1135 = vmatprep.subr.mxu0 0.0
        %1136 = vmatpush1.msra.mxu0 0.0
        %1137 = vmatprep.subr.mxu0 0.0
        %1138 = vmatpush1.msra.mxu0 0.0
        %1139 = vmatprep.subr.mxu0 0.0
        %1140 = vmatpush1.msra.mxu0 0.0
        %1141 = vmatprep.subr.mxu0 0.0
        %1142 = vmatpush1.msra.mxu0 0.0
        %1143 = vmatprep.subr.mxu0 0.0
        %1144 = vmatpush1.msra.mxu0 0.0
        %1145 = vmatprep.subr.mxu0 0.0
        %1146 = vmatpush1.msra.mxu0 0.0
        %1147 = vmatprep.subr.mxu0 0.0
        %1148 = vmatpush1.msra.mxu0 0.0
        %1149 = vmatprep.subr.mxu0 0.0
        %1150 = vmatpush1.msra.mxu0 0.0
        %1151 = vmatprep.subr.mxu0 0.0
        %1152 = vmatpush1.msra.mxu0 0.0
        %1153 = vmatprep.subr.mxu0 0.0
        %1154 = vmatpush1.msra.mxu0 0.0
        %1155 = vmatprep.subr.mxu0 0.0
        %1156 = vmatpush1.msra.mxu0 0.0
        %1157 = vmatprep.subr.mxu0 0.0
        %1158 = vmatpush1.msra.mxu0 0.0
        %1159 = vmatprep.subr.mxu0 0.0
        %1160 = vmatpush1.msra.mxu0 0.0
        %1161 = vmatprep.subr.mxu0 0.0
        %1162 = vmatpush1.msra.mxu0 0.0
        %1163 = vmatprep.subr.mxu0 0.0
        %1164 = vmatpush1.msra.mxu0 0.0
        %1165 = vmatprep.subr.mxu0 0.0
        %1166 = vmatpush1.msra.mxu0 0.0
        %1167 = vmatprep.subr.mxu0 0.0
        %1168 = vmatpush1.msra.mxu0 0.0
        %1169 = vmatprep.subr.mxu0 0.0
        %1170 = vmatpush1.msra.mxu0 0.0
        %1171 = vmatprep.subr.mxu0 0.0
        %1172 = vmatpush1.msra.mxu0 0.0
        %1173 = vmatprep.subr.mxu0 0.0
        %1174 = vmatpush1.msra.mxu0 0.0
        %1175 = vmatprep.subr.mxu0 0.0
        %1176 = vmatpush1.msra.mxu0 0.0
        %1177 = vmatprep.subr.mxu0 0.0
        %1178 = vmatpush1.msra.mxu0 0.0
        %1179 = vmatprep.subr.mxu0 0.0
        %1180 = vmatpush1.msra.mxu0 0.0
        %1181 = vmatprep.subr.mxu0 0.0
        %1182 = vmatpush1.msra.mxu0 0.0
        %1183 = vmatprep.subr.mxu0 0.0
        %1184 = vmatpush1.msra.mxu0 0.0
        %1185 = vmatprep.mubr.f32.mxu0 0.0
        %1186 = vmatmul.mubr.f32.gmra.mrb[0].mxu0 %v1116
        %v1187 = vpop.f32.mrb[0].mxu0
        %v1188 = vadd.f32 0.0, %v1187
        %v1189 = vpop.f32.mrb[0].mxu0
        %1190 = vmatprep.mubr.f32.mxu0 0.0
        %1191 = vmatmul.mubr.f32.gmra.mrb[0].mxu0 %v1119
        %v1192 = vpop.f32.mrb[0].mxu0
        %v1193 = vadd.f32 0.0, %v1192
        %v1194 = vpop.f32.mrb[0].mxu0
        %1195 = vdwg.mxu0
        %v1197 = vsel %vm364, %v1101, 0
        %v1200 = vsel %vm364, %v1102, 0
        %1202 = vmatprep.subr.mxu0 0.0
        %1203 = vmatpush1.msra.mxu0 %v330
        %1204 = vmatprep.subr.mxu0 0.0
        %1205 = vmatpush1.msra.mxu0 %v331
        %1206 = vmatprep.subr.mxu0 0.0
        %1207 = vmatpush1.msra.mxu0 0.0
        %1208 = vmatprep.subr.mxu0 0.0
        %1209 = vmatpush1.msra.mxu0 0.0
        %1210 = vmatprep.subr.mxu0 0.0
        %1211 = vmatpush1.msra.mxu0 0.0
        %1212 = vmatprep.subr.mxu0 0.0
        %1213 = vmatpush1.msra.mxu0 0.0
        %1214 = vmatprep.subr.mxu0 0.0
        %1215 = vmatpush1.msra.mxu0 0.0
        %1216 = vmatprep.subr.mxu0 0.0
        %1217 = vmatpush1.msra.mxu0 0.0
        %1218 = vmatprep.subr.mxu0 0.0
        %1219 = vmatpush1.msra.mxu0 0.0
        %1220 = vmatprep.subr.mxu0 0.0
        %1221 = vmatpush1.msra.mxu0 0.0
        %1222 = vmatprep.subr.mxu0 0.0
        %1223 = vmatpush1.msra.mxu0 0.0
        %1224 = vmatprep.subr.mxu0 0.0
        %1225 = vmatpush1.msra.mxu0 0.0
        %1226 = vmatprep.subr.mxu0 0.0
        %1227 = vmatpush1.msra.mxu0 0.0
        %1228 = vmatprep.subr.mxu0 0.0
        %1229 = vmatpush1.msra.mxu0 0.0
        %1230 = vmatprep.subr.mxu0 0.0
        %1231 = vmatpush1.msra.mxu0 0.0
        %1232 = vmatprep.subr.mxu0 0.0
        %1233 = vmatpush1.msra.mxu0 0.0
        %1234 = vmatprep.subr.mxu0 0.0
        %1235 = vmatpush1.msra.mxu0 0.0
        %1236 = vmatprep.subr.mxu0 0.0
        %1237 = vmatpush1.msra.mxu0 0.0
        %1238 = vmatprep.subr.mxu0 0.0
        %1239 = vmatpush1.msra.mxu0 0.0
        %1240 = vmatprep.subr.mxu0 0.0
        %1241 = vmatpush1.msra.mxu0 0.0
        %1242 = vmatprep.subr.mxu0 0.0
        %1243 = vmatpush1.msra.mxu0 0.0
        %1244 = vmatprep.subr.mxu0 0.0
        %1245 = vmatpush1.msra.mxu0 0.0
        %1246 = vmatprep.subr.mxu0 0.0
        %1247 = vmatpush1.msra.mxu0 0.0
        %1248 = vmatprep.subr.mxu0 0.0
        %1249 = vmatpush1.msra.mxu0 0.0
        %1250 = vmatprep.subr.mxu0 0.0
        %1251 = vmatpush1.msra.mxu0 0.0
        %1252 = vmatprep.subr.mxu0 0.0
        %1253 = vmatpush1.msra.mxu0 0.0
        %1254 = vmatprep.subr.mxu0 0.0
        %1255 = vmatpush1.msra.mxu0 0.0
        %1256 = vmatprep.subr.mxu0 0.0
        %1257 = vmatpush1.msra.mxu0 0.0
        %1258 = vmatprep.subr.mxu0 0.0
        %1259 = vmatpush1.msra.mxu0 0.0
        %1260 = vmatprep.subr.mxu0 0.0
        %1261 = vmatpush1.msra.mxu0 0.0
        %1262 = vmatprep.subr.mxu0 0.0
        %1263 = vmatpush1.msra.mxu0 0.0
        %1264 = vmatprep.subr.mxu0 0.0
        %1265 = vmatpush1.msra.mxu0 0.0
        %1266 = vmatprep.mubr.f32.mxu0 0.0
        %1267 = vmatmul.mubr.f32.gmra.mrb[0].mxu0 %v1197
        %v1268 = vpop.f32.mrb[0].mxu0
        %v1269 = vadd.f32 %v1188, %v1268
        %v1270 = vpop.f32.mrb[0].mxu0
        %1271 = vmatprep.mubr.f32.mxu0 0.0
        %1272 = vmatmul.mubr.f32.gmra.mrb[0].mxu0 %v1200
        %v1273 = vpop.f32.mrb[0].mxu0
        %v1274 = vadd.f32 %v1193, %v1273
        %v1275 = vpop.f32.mrb[0].mxu0
        %1276 = vdwg.mxu0
        %v1277 = vmax.f32 %v1089, %v1269
        %v1278 = vmax.f32 %v1090, %v1274
        %1279 = vset.pattern.permute.xlu0 5
        %1280 = vperm.xlu0 %1279, %v334
        %v1281 = vpop.permute.xlu0 %1280
        %1282 = vset.pattern.permute.xlu0 5
        %1283 = vperm.xlu0 %1282, %v335
        %v1284 = vpop.permute.xlu0 %1283
        %vm1285 = vcmp.eq.s32.totalorder %v1281, %v339
        %vm1286 = vcmp.eq.s32.totalorder %v1284, %v339
        %v1287 = vsel %vm1285, 1, 0
        %v1288 = vsel %vm1286, 1, 0
        %v1289 = vcvt.s32.f32 %v1287
        %v1290 = vcvt.s32.f32 %v1288
        %1291 = vset.pattern.permute.xlu0 5
        %1292 = vperm.xlu0 %1291, %v336
        %v1293 = vpop.permute.xlu0 %1292
        %1294 = vset.pattern.permute.xlu0 5
        %1295 = vperm.xlu0 %1294, %v337
        %v1296 = vpop.permute.xlu0 %1295
        %vm1297 = vcmp.eq.s32.totalorder %v1293, %v339
        %vm1298 = vcmp.eq.s32.totalorder %v1296, %v339
        %v1299 = vsel %vm1297, 1, 0
        %v1300 = vsel %vm1298, 1, 0
        %v1301 = vcvt.s32.f32 %v1299
        %v1302 = vcvt.s32.f32 %v1300
        %v1304 = vsel %vm364, %v1301, 0
        %v1307 = vsel %vm364, %v1302, 0
        %1309 = vmatprep.subr.mxu0 0.0
        %1310 = vmatpush1.msra.mxu0 %v332
        %1311 = vmatprep.subr.mxu0 0.0
        %1312 = vmatpush1.msra.mxu0 %v333
        %1313 = vmatprep.subr.mxu0 0.0
        %1314 = vmatpush1.msra.mxu0 0.0
        %1315 = vmatprep.subr.mxu0 0.0
        %1316 = vmatpush1.msra.mxu0 0.0
        %1317 = vmatprep.subr.mxu0 0.0
        %1318 = vmatpush1.msra.mxu0 0.0
        %1319 = vmatprep.subr.mxu0 0.0
        %1320 = vmatpush1.msra.mxu0 0.0
        %1321 = vmatprep.subr.mxu0 0.0
        %1322 = vmatpush1.msra.mxu0 0.0
        %1323 = vmatprep.subr.mxu0 0.0
        %1324 = vmatpush1.msra.mxu0 0.0
        %1325 = vmatprep.subr.mxu0 0.0
        %1326 = vmatpush1.msra.mxu0 0.0
        %1327 = vmatprep.subr.mxu0 0.0
        %1328 = vmatpush1.msra.mxu0 0.0
        %1329 = vmatprep.subr.mxu0 0.0
        %1330 = vmatpush1.msra.mxu0 0.0
        %1331 = vmatprep.subr.mxu0 0.0
        %1332 = vmatpush1.msra.mxu0 0.0
        %1333 = vmatprep.subr.mxu0 0.0
        %1334 = vmatpush1.msra.mxu0 0.0
        %1335 = vmatprep.subr.mxu0 0.0
        %1336 = vmatpush1.msra.mxu0 0.0
        %1337 = vmatprep.subr.mxu0 0.0
        %1338 = vmatpush1.msra.mxu0 0.0
        %1339 = vmatprep.subr.mxu0 0.0
        %1340 = vmatpush1.msra.mxu0 0.0
        %1341 = vmatprep.subr.mxu0 0.0
        %1342 = vmatpush1.msra.mxu0 0.0
        %1343 = vmatprep.subr.mxu0 0.0
        %1344 = vmatpush1.msra.mxu0 0.0
        %1345 = vmatprep.subr.mxu0 0.0
        %1346 = vmatpush1.msra.mxu0 0.0
        %1347 = vmatprep.subr.mxu0 0.0
        %1348 = vmatpush1.msra.mxu0 0.0
        %1349 = vmatprep.subr.mxu0 0.0
        %1350 = vmatpush1.msra.mxu0 0.0
        %1351 = vmatprep.subr.mxu0 0.0
        %1352 = vmatpush1.msra.mxu0 0.0
        %1353 = vmatprep.subr.mxu0 0.0
        %1354 = vmatpush1.msra.mxu0 0.0
        %1355 = vmatprep.subr.mxu0 0.0
        %1356 = vmatpush1.msra.mxu0 0.0
        %1357 = vmatprep.subr.mxu0 0.0
        %1358 = vmatpush1.msra.mxu0 0.0
        %1359 = vmatprep.subr.mxu0 0.0
        %1360 = vmatpush1.msra.mxu0 0.0
        %1361 = vmatprep.subr.mxu0 0.0
        %1362 = vmatpush1.msra.mxu0 0.0
        %1363 = vmatprep.subr.mxu0 0.0
        %1364 = vmatpush1.msra.mxu0 0.0
        %1365 = vmatprep.subr.mxu0 0.0
        %1366 = vmatpush1.msra.mxu0 0.0
        %1367 = vmatprep.subr.mxu0 0.0
        %1368 = vmatpush1.msra.mxu0 0.0
        %1369 = vmatprep.subr.mxu0 0.0
        %1370 = vmatpush1.msra.mxu0 0.0
        %1371 = vmatprep.subr.mxu0 0.0
        %1372 = vmatpush1.msra.mxu0 0.0
        %1373 = vmatprep.mubr.f32.mxu0 0.0
        %1374 = vmatmul.mubr.f32.gmra.mrb[0].mxu0 %v1304
        %v1375 = vpop.f32.mrb[0].mxu0
        %v1376 = vadd.f32 0.0, %v1375
        %v1377 = vpop.f32.mrb[0].mxu0
        %1378 = vmatprep.mubr.f32.mxu0 0.0
        %1379 = vmatmul.mubr.f32.gmra.mrb[0].mxu0 %v1307
        %v1380 = vpop.f32.mrb[0].mxu0
        %v1381 = vadd.f32 0.0, %v1380
        %v1382 = vpop.f32.mrb[0].mxu0
        %1383 = vdwg.mxu0
        %v1385 = vsel %vm364, %v1289, 0
        %v1388 = vsel %vm364, %v1290, 0
        %1390 = vmatprep.subr.mxu0 0.0
        %1391 = vmatpush1.msra.mxu0 %v330
        %1392 = vmatprep.subr.mxu0 0.0
        %1393 = vmatpush1.msra.mxu0 %v331
        %1394 = vmatprep.subr.mxu0 0.0
        %1395 = vmatpush1.msra.mxu0 0.0
        %1396 = vmatprep.subr.mxu0 0.0
        %1397 = vmatpush1.msra.mxu0 0.0
        %1398 = vmatprep.subr.mxu0 0.0
        %1399 = vmatpush1.msra.mxu0 0.0
        %1400 = vmatprep.subr.mxu0 0.0
        %1401 = vmatpush1.msra.mxu0 0.0
        %1402 = vmatprep.subr.mxu0 0.0
        %1403 = vmatpush1.msra.mxu0 0.0
        %1404 = vmatprep.subr.mxu0 0.0
        %1405 = vmatpush1.msra.mxu0 0.0
        %1406 = vmatprep.subr.mxu0 0.0
        %1407 = vmatpush1.msra.mxu0 0.0
        %1408 = vmatprep.subr.mxu0 0.0
        %1409 = vmatpush1.msra.mxu0 0.0
        %1410 = vmatprep.subr.mxu0 0.0
        %1411 = vmatpush1.msra.mxu0 0.0
        %1412 = vmatprep.subr.mxu0 0.0
        %1413 = vmatpush1.msra.mxu0 0.0
        %1414 = vmatprep.subr.mxu0 0.0
        %1415 = vmatpush1.msra.mxu0 0.0
        %1416 = vmatprep.subr.mxu0 0.0
        %1417 = vmatpush1.msra.mxu0 0.0
        %1418 = vmatprep.subr.mxu0 0.0
        %1419 = vmatpush1.msra.mxu0 0.0
        %1420 = vmatprep.subr.mxu0 0.0
        %1421 = vmatpush1.msra.mxu0 0.0
        %1422 = vmatprep.subr.mxu0 0.0
        %1423 = vmatpush1.msra.mxu0 0.0
        %1424 = vmatprep.subr.mxu0 0.0
        %1425 = vmatpush1.msra.mxu0 0.0
        %1426 = vmatprep.subr.mxu0 0.0
        %1427 = vmatpush1.msra.mxu0 0.0
        %1428 = vmatprep.subr.mxu0 0.0
        %1429 = vmatpush1.msra.mxu0 0.0
        %1430 = vmatprep.subr.mxu0 0.0
        %1431 = vmatpush1.msra.mxu0 0.0
        %1432 = vmatprep.subr.mxu0 0.0
        %1433 = vmatpush1.msra.mxu0 0.0
        %1434 = vmatprep.subr.mxu0 0.0
        %1435 = vmatpush1.msra.mxu0 0.0
        %1436 = vmatprep.subr.mxu0 0.0
        %1437 = vmatpush1.msra.mxu0 0.0
        %1438 = vmatprep.subr.mxu0 0.0
        %1439 = vmatpush1.msra.mxu0 0.0
        %1440 = vmatprep.subr.mxu0 0.0
        %1441 = vmatpush1.msra.mxu0 0.0
        %1442 = vmatprep.subr.mxu0 0.0
        %1443 = vmatpush1.msra.mxu0 0.0
        %1444 = vmatprep.subr.mxu0 0.0
        %1445 = vmatpush1.msra.mxu0 0.0
        %1446 = vmatprep.subr.mxu0 0.0
        %1447 = vmatpush1.msra.mxu0 0.0
        %1448 = vmatprep.subr.mxu0 0.0
        %1449 = vmatpush1.msra.mxu0 0.0
        %1450 = vmatprep.subr.mxu0 0.0
        %1451 = vmatpush1.msra.mxu0 0.0
        %1452 = vmatprep.subr.mxu0 0.0
        %1453 = vmatpush1.msra.mxu0 0.0
        %1454 = vmatprep.mubr.f32.mxu0 0.0
        %1455 = vmatmul.mubr.f32.gmra.mrb[0].mxu0 %v1385
        %v1456 = vpop.f32.mrb[0].mxu0
        %v1457 = vadd.f32 %v1376, %v1456
        %v1458 = vpop.f32.mrb[0].mxu0
        %1459 = vmatprep.mubr.f32.mxu0 0.0
        %1460 = vmatmul.mubr.f32.gmra.mrb[0].mxu0 %v1388
        %v1461 = vpop.f32.mrb[0].mxu0
        %v1462 = vadd.f32 %v1381, %v1461
        %v1463 = vpop.f32.mrb[0].mxu0
        %1464 = vdwg.mxu0
        %v1465 = vmax.f32 %v1277, %v1457
        %v1466 = vmax.f32 %v1278, %v1462
        %1467 = vset.pattern.permute.xlu0 6
        %1468 = vperm.xlu0 %1467, %v334
        %v1469 = vpop.permute.xlu0 %1468
        %1470 = vset.pattern.permute.xlu0 6
        %1471 = vperm.xlu0 %1470, %v335
        %v1472 = vpop.permute.xlu0 %1471
        %vm1473 = vcmp.eq.s32.totalorder %v1469, %v339
        %vm1474 = vcmp.eq.s32.totalorder %v1472, %v339
        %v1475 = vsel %vm1473, 1, 0
        %v1476 = vsel %vm1474, 1, 0
        %v1477 = vcvt.s32.f32 %v1475
        %v1478 = vcvt.s32.f32 %v1476
        %1479 = vset.pattern.permute.xlu0 6
        %1480 = vperm.xlu0 %1479, %v336
        %v1481 = vpop.permute.xlu0 %1480
        %1482 = vset.pattern.permute.xlu0 6
        %1483 = vperm.xlu0 %1482, %v337
        %v1484 = vpop.permute.xlu0 %1483
        %vm1485 = vcmp.eq.s32.totalorder %v1481, %v339
        %vm1486 = vcmp.eq.s32.totalorder %v1484, %v339
        %v1487 = vsel %vm1485, 1, 0
        %v1488 = vsel %vm1486, 1, 0
        %v1489 = vcvt.s32.f32 %v1487
        %v1490 = vcvt.s32.f32 %v1488
        %v1492 = vsel %vm364, %v1489, 0
        %v1495 = vsel %vm364, %v1490, 0
        %1497 = vmatprep.subr.mxu0 0.0
        %1498 = vmatpush1.msra.mxu0 %v332
        %1499 = vmatprep.subr.mxu0 0.0
        %1500 = vmatpush1.msra.mxu0 %v333
        %1501 = vmatprep.subr.mxu0 0.0
        %1502 = vmatpush1.msra.mxu0 0.0
        %1503 = vmatprep.subr.mxu0 0.0
        %1504 = vmatpush1.msra.mxu0 0.0
        %1505 = vmatprep.subr.mxu0 0.0
        %1506 = vmatpush1.msra.mxu0 0.0
        %1507 = vmatprep.subr.mxu0 0.0
        %1508 = vmatpush1.msra.mxu0 0.0
        %1509 = vmatprep.subr.mxu0 0.0
        %1510 = vmatpush1.msra.mxu0 0.0
        %1511 = vmatprep.subr.mxu0 0.0
        %1512 = vmatpush1.msra.mxu0 0.0
        %1513 = vmatprep.subr.mxu0 0.0
        %1514 = vmatpush1.msra.mxu0 0.0
        %1515 = vmatprep.subr.mxu0 0.0
        %1516 = vmatpush1.msra.mxu0 0.0
        %1517 = vmatprep.subr.mxu0 0.0
        %1518 = vmatpush1.msra.mxu0 0.0
        %1519 = vmatprep.subr.mxu0 0.0
        %1520 = vmatpush1.msra.mxu0 0.0
        %1521 = vmatprep.subr.mxu0 0.0
        %1522 = vmatpush1.msra.mxu0 0.0
        %1523 = vmatprep.subr.mxu0 0.0
        %1524 = vmatpush1.msra.mxu0 0.0
        %1525 = vmatprep.subr.mxu0 0.0
        %1526 = vmatpush1.msra.mxu0 0.0
        %1527 = vmatprep.subr.mxu0 0.0
        %1528 = vmatpush1.msra.mxu0 0.0
        %1529 = vmatprep.subr.mxu0 0.0
        %1530 = vmatpush1.msra.mxu0 0.0
        %1531 = vmatprep.subr.mxu0 0.0
        %1532 = vmatpush1.msra.mxu0 0.0
        %1533 = vmatprep.subr.mxu0 0.0
        %1534 = vmatpush1.msra.mxu0 0.0
        %1535 = vmatprep.subr.mxu0 0.0
        %1536 = vmatpush1.msra.mxu0 0.0
        %1537 = vmatprep.subr.mxu0 0.0
        %1538 = vmatpush1.msra.mxu0 0.0
        %1539 = vmatprep.subr.mxu0 0.0
        %1540 = vmatpush1.msra.mxu0 0.0
        %1541 = vmatprep.subr.mxu0 0.0
        %1542 = vmatpush1.msra.mxu0 0.0
        %1543 = vmatprep.subr.mxu0 0.0
        %1544 = vmatpush1.msra.mxu0 0.0
        %1545 = vmatprep.subr.mxu0 0.0
        %1546 = vmatpush1.msra.mxu0 0.0
        %1547 = vmatprep.subr.mxu0 0.0
        %1548 = vmatpush1.msra.mxu0 0.0
        %1549 = vmatprep.subr.mxu0 0.0
        %1550 = vmatpush1.msra.mxu0 0.0
        %1551 = vmatprep.subr.mxu0 0.0
        %1552 = vmatpush1.msra.mxu0 0.0
        %1553 = vmatprep.subr.mxu0 0.0
        %1554 = vmatpush1.msra.mxu0 0.0
        %1555 = vmatprep.subr.mxu0 0.0
        %1556 = vmatpush1.msra.mxu0 0.0
        %1557 = vmatprep.subr.mxu0 0.0
        %1558 = vmatpush1.msra.mxu0 0.0
        %1559 = vmatprep.subr.mxu0 0.0
        %1560 = vmatpush1.msra.mxu0 0.0
        %1561 = vmatprep.mubr.f32.mxu0 0.0
        %1562 = vmatmul.mubr.f32.gmra.mrb[0].mxu0 %v1492
        %v1563 = vpop.f32.mrb[0].mxu0
        %v1564 = vadd.f32 0.0, %v1563
        %v1565 = vpop.f32.mrb[0].mxu0
        %1566 = vmatprep.mubr.f32.mxu0 0.0
        %1567 = vmatmul.mubr.f32.gmra.mrb[0].mxu0 %v1495
        %v1568 = vpop.f32.mrb[0].mxu0
        %v1569 = vadd.f32 0.0, %v1568
        %v1570 = vpop.f32.mrb[0].mxu0
        %1571 = vdwg.mxu0
        %v1573 = vsel %vm364, %v1477, 0
        %v1576 = vsel %vm364, %v1478, 0
        %1578 = vmatprep.subr.mxu0 0.0
        %1579 = vmatpush1.msra.mxu0 %v330
        %1580 = vmatprep.subr.mxu0 0.0
        %1581 = vmatpush1.msra.mxu0 %v331
        %1582 = vmatprep.subr.mxu0 0.0
        %1583 = vmatpush1.msra.mxu0 0.0
        %1584 = vmatprep.subr.mxu0 0.0
        %1585 = vmatpush1.msra.mxu0 0.0
        %1586 = vmatprep.subr.mxu0 0.0
        %1587 = vmatpush1.msra.mxu0 0.0
        %1588 = vmatprep.subr.mxu0 0.0
        %1589 = vmatpush1.msra.mxu0 0.0
        %1590 = vmatprep.subr.mxu0 0.0
        %1591 = vmatpush1.msra.mxu0 0.0
        %1592 = vmatprep.subr.mxu0 0.0
        %1593 = vmatpush1.msra.mxu0 0.0
        %1594 = vmatprep.subr.mxu0 0.0
        %1595 = vmatpush1.msra.mxu0 0.0
        %1596 = vmatprep.subr.mxu0 0.0
        %1597 = vmatpush1.msra.mxu0 0.0
        %1598 = vmatprep.subr.mxu0 0.0
        %1599 = vmatpush1.msra.mxu0 0.0
        %1600 = vmatprep.subr.mxu0 0.0
        %1601 = vmatpush1.msra.mxu0 0.0
        %1602 = vmatprep.subr.mxu0 0.0
        %1603 = vmatpush1.msra.mxu0 0.0
        %1604 = vmatprep.subr.mxu0 0.0
        %1605 = vmatpush1.msra.mxu0 0.0
        %1606 = vmatprep.subr.mxu0 0.0
        %1607 = vmatpush1.msra.mxu0 0.0
        %1608 = vmatprep.subr.mxu0 0.0
        %1609 = vmatpush1.msra.mxu0 0.0
        %1610 = vmatprep.subr.mxu0 0.0
        %1611 = vmatpush1.msra.mxu0 0.0
        %1612 = vmatprep.subr.mxu0 0.0
        %1613 = vmatpush1.msra.mxu0 0.0
        %1614 = vmatprep.subr.mxu0 0.0
        %1615 = vmatpush1.msra.mxu0 0.0
        %1616 = vmatprep.subr.mxu0 0.0
        %1617 = vmatpush1.msra.mxu0 0.0
        %1618 = vmatprep.subr.mxu0 0.0
        %1619 = vmatpush1.msra.mxu0 0.0
        %1620 = vmatprep.subr.mxu0 0.0
        %1621 = vmatpush1.msra.mxu0 0.0
        %1622 = vmatprep.subr.mxu0 0.0
        %1623 = vmatpush1.msra.mxu0 0.0
        %1624 = vmatprep.subr.mxu0 0.0
        %1625 = vmatpush1.msra.mxu0 0.0
        %1626 = vmatprep.subr.mxu0 0.0
        %1627 = vmatpush1.msra.mxu0 0.0
        %1628 = vmatprep.subr.mxu0 0.0
        %1629 = vmatpush1.msra.mxu0 0.0
        %1630 = vmatprep.subr.mxu0 0.0
        %1631 = vmatpush1.msra.mxu0 0.0
        %1632 = vmatprep.subr.mxu0 0.0
        %1633 = vmatpush1.msra.mxu0 0.0
        %1634 = vmatprep.subr.mxu0 0.0
        %1635 = vmatpush1.msra.mxu0 0.0
        %1636 = vmatprep.subr.mxu0 0.0
        %1637 = vmatpush1.msra.mxu0 0.0
        %1638 = vmatprep.subr.mxu0 0.0
        %1639 = vmatpush1.msra.mxu0 0.0
        %1640 = vmatprep.subr.mxu0 0.0
        %1641 = vmatpush1.msra.mxu0 0.0
        %1642 = vmatprep.mubr.f32.mxu0 0.0
        %1643 = vmatmul.mubr.f32.gmra.mrb[0].mxu0 %v1573
        %v1644 = vpop.f32.mrb[0].mxu0
        %v1645 = vadd.f32 %v1564, %v1644
        %v1646 = vpop.f32.mrb[0].mxu0
        %1647 = vmatprep.mubr.f32.mxu0 0.0
        %1648 = vmatmul.mubr.f32.gmra.mrb[0].mxu0 %v1576
        %v1649 = vpop.f32.mrb[0].mxu0
        %v1650 = vadd.f32 %v1569, %v1649
        %v1651 = vpop.f32.mrb[0].mxu0
        %1652 = vdwg.mxu0
        %v1653 = vmax.f32 %v1465, %v1645
        %v1654 = vmax.f32 %v1466, %v1650
        %1655 = vset.pattern.permute.xlu0 7
        %1656 = vperm.xlu0 %1655, %v334
        %v1657 = vpop.permute.xlu0 %1656
        %1658 = vset.pattern.permute.xlu0 7
        %1659 = vperm.xlu0 %1658, %v335
        %v1660 = vpop.permute.xlu0 %1659
        %vm1661 = vcmp.eq.s32.totalorder %v1657, %v339
        %vm1662 = vcmp.eq.s32.totalorder %v1660, %v339
        %v1663 = vsel %vm1661, 1, 0
        %v1664 = vsel %vm1662, 1, 0
        %v1665 = vcvt.s32.f32 %v1663
        %v1666 = vcvt.s32.f32 %v1664
        %1667 = vset.pattern.permute.xlu0 7
        %1668 = vperm.xlu0 %1667, %v336
        %v1669 = vpop.permute.xlu0 %1668
        %1670 = vset.pattern.permute.xlu0 7
        %1671 = vperm.xlu0 %1670, %v337
        %v1672 = vpop.permute.xlu0 %1671
        %vm1673 = vcmp.eq.s32.totalorder %v1669, %v339
        %vm1674 = vcmp.eq.s32.totalorder %v1672, %v339
        %v1675 = vsel %vm1673, 1, 0
        %v1676 = vsel %vm1674, 1, 0
        %v1677 = vcvt.s32.f32 %v1675
        %v1678 = vcvt.s32.f32 %v1676
        %v1680 = vsel %vm364, %v1677, 0
        %v1683 = vsel %vm364, %v1678, 0
        %1685 = vmatprep.subr.mxu0 0.0
        %1686 = vmatpush1.msra.mxu0 %v332
        %1687 = vmatprep.subr.mxu0 0.0
        %1688 = vmatpush1.msra.mxu0 %v333
        %1689 = vmatprep.subr.mxu0 0.0
        %1690 = vmatpush1.msra.mxu0 0.0
        %1691 = vmatprep.subr.mxu0 0.0
        %1692 = vmatpush1.msra.mxu0 0.0
        %1693 = vmatprep.subr.mxu0 0.0
        %1694 = vmatpush1.msra.mxu0 0.0
        %1695 = vmatprep.subr.mxu0 0.0
        %1696 = vmatpush1.msra.mxu0 0.0
        %1697 = vmatprep.subr.mxu0 0.0
        %1698 = vmatpush1.msra.mxu0 0.0
        %1699 = vmatprep.subr.mxu0 0.0
        %1700 = vmatpush1.msra.mxu0 0.0
        %1701 = vmatprep.subr.mxu0 0.0
        %1702 = vmatpush1.msra.mxu0 0.0
        %1703 = vmatprep.subr.mxu0 0.0
        %1704 = vmatpush1.msra.mxu0 0.0
        %1705 = vmatprep.subr.mxu0 0.0
        %1706 = vmatpush1.msra.mxu0 0.0
        %1707 = vmatprep.subr.mxu0 0.0
        %1708 = vmatpush1.msra.mxu0 0.0
        %1709 = vmatprep.subr.mxu0 0.0
        %1710 = vmatpush1.msra.mxu0 0.0
        %1711 = vmatprep.subr.mxu0 0.0
        %1712 = vmatpush1.msra.mxu0 0.0
        %1713 = vmatprep.subr.mxu0 0.0
        %1714 = vmatpush1.msra.mxu0 0.0
        %1715 = vmatprep.subr.mxu0 0.0
        %1716 = vmatpush1.msra.mxu0 0.0
        %1717 = vmatprep.subr.mxu0 0.0
        %1718 = vmatpush1.msra.mxu0 0.0
        %1719 = vmatprep.subr.mxu0 0.0
        %1720 = vmatpush1.msra.mxu0 0.0
        %1721 = vmatprep.subr.mxu0 0.0
        %1722 = vmatpush1.msra.mxu0 0.0
        %1723 = vmatprep.subr.mxu0 0.0
        %1724 = vmatpush1.msra.mxu0 0.0
        %1725 = vmatprep.subr.mxu0 0.0
        %1726 = vmatpush1.msra.mxu0 0.0
        %1727 = vmatprep.subr.mxu0 0.0
        %1728 = vmatpush1.msra.mxu0 0.0
        %1729 = vmatprep.subr.mxu0 0.0
        %1730 = vmatpush1.msra.mxu0 0.0
        %1731 = vmatprep.subr.mxu0 0.0
        %1732 = vmatpush1.msra.mxu0 0.0
        %1733 = vmatprep.subr.mxu0 0.0
        %1734 = vmatpush1.msra.mxu0 0.0
        %1735 = vmatprep.subr.mxu0 0.0
        %1736 = vmatpush1.msra.mxu0 0.0
        %1737 = vmatprep.subr.mxu0 0.0
        %1738 = vmatpush1.msra.mxu0 0.0
        %1739 = vmatprep.subr.mxu0 0.0
        %1740 = vmatpush1.msra.mxu0 0.0
        %1741 = vmatprep.subr.mxu0 0.0
        %1742 = vmatpush1.msra.mxu0 0.0
        %1743 = vmatprep.subr.mxu0 0.0
        %1744 = vmatpush1.msra.mxu0 0.0
        %1745 = vmatprep.subr.mxu0 0.0
        %1746 = vmatpush1.msra.mxu0 0.0
        %1747 = vmatprep.subr.mxu0 0.0
        %1748 = vmatpush1.msra.mxu0 0.0
        %1749 = vmatprep.mubr.f32.mxu0 0.0
        %1750 = vmatmul.mubr.f32.gmra.mrb[0].mxu0 %v1680
        %v1751 = vpop.f32.mrb[0].mxu0
        %v1752 = vadd.f32 0.0, %v1751
        %v1753 = vpop.f32.mrb[0].mxu0
        %1754 = vmatprep.mubr.f32.mxu0 0.0
        %1755 = vmatmul.mubr.f32.gmra.mrb[0].mxu0 %v1683
        %v1756 = vpop.f32.mrb[0].mxu0
        %v1757 = vadd.f32 0.0, %v1756
        %v1758 = vpop.f32.mrb[0].mxu0
        %1759 = vdwg.mxu0
        %v1761 = vsel %vm364, %v1665, 0
        %v1764 = vsel %vm364, %v1666, 0
        %1766 = vmatprep.subr.mxu0 0.0
        %1767 = vmatpush1.msra.mxu0 %v330
        %1768 = vmatprep.subr.mxu0 0.0
        %1769 = vmatpush1.msra.mxu0 %v331
        %1770 = vmatprep.subr.mxu0 0.0
        %1771 = vmatpush1.msra.mxu0 0.0
        %1772 = vmatprep.subr.mxu0 0.0
        %1773 = vmatpush1.msra.mxu0 0.0
        %1774 = vmatprep.subr.mxu0 0.0
        %1775 = vmatpush1.msra.mxu0 0.0
        %1776 = vmatprep.subr.mxu0 0.0
        %1777 = vmatpush1.msra.mxu0 0.0
        %1778 = vmatprep.subr.mxu0 0.0
        %1779 = vmatpush1.msra.mxu0 0.0
        %1780 = vmatprep.subr.mxu0 0.0
        %1781 = vmatpush1.msra.mxu0 0.0
        %1782 = vmatprep.subr.mxu0 0.0
        %1783 = vmatpush1.msra.mxu0 0.0
        %1784 = vmatprep.subr.mxu0 0.0
        %1785 = vmatpush1.msra.mxu0 0.0
        %1786 = vmatprep.subr.mxu0 0.0
        %1787 = vmatpush1.msra.mxu0 0.0
        %1788 = vmatprep.subr.mxu0 0.0
        %1789 = vmatpush1.msra.mxu0 0.0
        %1790 = vmatprep.subr.mxu0 0.0
        %1791 = vmatpush1.msra.mxu0 0.0
        %1792 = vmatprep.subr.mxu0 0.0
        %1793 = vmatpush1.msra.mxu0 0.0
        %1794 = vmatprep.subr.mxu0 0.0
        %1795 = vmatpush1.msra.mxu0 0.0
        %1796 = vmatprep.subr.mxu0 0.0
        %1797 = vmatpush1.msra.mxu0 0.0
        %1798 = vmatprep.subr.mxu0 0.0
        %1799 = vmatpush1.msra.mxu0 0.0
        %1800 = vmatprep.subr.mxu0 0.0
        %1801 = vmatpush1.msra.mxu0 0.0
        %1802 = vmatprep.subr.mxu0 0.0
        %1803 = vmatpush1.msra.mxu0 0.0
        %1804 = vmatprep.subr.mxu0 0.0
        %1805 = vmatpush1.msra.mxu0 0.0
        %1806 = vmatprep.subr.mxu0 0.0
        %1807 = vmatpush1.msra.mxu0 0.0
        %1808 = vmatprep.subr.mxu0 0.0
        %1809 = vmatpush1.msra.mxu0 0.0
        %1810 = vmatprep.subr.mxu0 0.0
        %1811 = vmatpush1.msra.mxu0 0.0
        %1812 = vmatprep.subr.mxu0 0.0
        %1813 = vmatpush1.msra.mxu0 0.0
        %1814 = vmatprep.subr.mxu0 0.0
        %1815 = vmatpush1.msra.mxu0 0.0
        %1816 = vmatprep.subr.mxu0 0.0
        %1817 = vmatpush1.msra.mxu0 0.0
        %1818 = vmatprep.subr.mxu0 0.0
        %1819 = vmatpush1.msra.mxu0 0.0
        %1820 = vmatprep.subr.mxu0 0.0
        %1821 = vmatpush1.msra.mxu0 0.0
        %1822 = vmatprep.subr.mxu0 0.0
        %1823 = vmatpush1.msra.mxu0 0.0
        %1824 = vmatprep.subr.mxu0 0.0
        %1825 = vmatpush1.msra.mxu0 0.0
        %1826 = vmatprep.subr.mxu0 0.0
        %1827 = vmatpush1.msra.mxu0 0.0
        %1828 = vmatprep.subr.mxu0 0.0
        %1829 = vmatpush1.msra.mxu0 0.0
        %1830 = vmatprep.mubr.f32.mxu0 0.0
        %1831 = vmatmul.mubr.f32.gmra.mrb[0].mxu0 %v1761
        %v1832 = vpop.f32.mrb[0].mxu0
        %v1833 = vadd.f32 %v1752, %v1832
        %v1834 = vpop.f32.mrb[0].mxu0
        %1835 = vmatprep.mubr.f32.mxu0 0.0
        %1836 = vmatmul.mubr.f32.gmra.mrb[0].mxu0 %v1764
        %v1837 = vpop.f32.mrb[0].mxu0
        %v1838 = vadd.f32 %v1757, %v1837
        %v1839 = vpop.f32.mrb[0].mxu0
        %1840 = vdwg.mxu0
        %v1841 = vmax.f32 %v1653, %v1833
        %v1842 = vmax.f32 %v1654, %v1838
        %v1843 = vld [vmem:[%s4] sm:$0x1]
        %v1845 = vlaneseq
        %v1846 = vshrl.u32 %v1845, 7
        %v1847 = vsub.s32 0, %v1846
        %v1848 = vrot.slane %v1843, %v1847
        %v1850 = vadd.f32 %v1841, %v1848
        %v1851 = vadd.f32 %v1842, %v1848
        %v1852 = vmax.f32 %v1850, 0.0
        %v1853 = vmax.f32 %v1851, 0.0
        %1854 = vst [vmem:[%s298] sm:$0xff] %v1852
        %1855 = vst [vmem:[%s298 + $0x8] sm:$0xff] %v1853
        %s1856 = sand.u32 %s170, 1
        %s1857 = scalar_lea.sflag [#allocation3], %s1856
        %s1858 = sand.u32 %s170, 1
        %s1859 = smul.addr %s1858, 16
        %s1860 = scalar_lea.vmem [#allocation2], %s1859
        // Predicated region
        $region41: #{tpu_custom_call.1} parent=39 // pred_check
          %p1861 = pneg %p180
        $region42: #{tpu_custom_call.1} parent=39 // pred_check_branch
          %1863 = sbr.rel (%p1861) target = $region44
        $region43: #{tpu_custom_call.1} parent=39 // pred_region
          %s1864 = smul.u32 2, %s24
          %s1866 = ssub.s32 256, 256
          %1867 = vsyncadd %s1857, %s1866
          %s1868 = smul.addr %s23, 2
          %s1869 = sadd.s32 %s1864, %s1868
          %s1870 = smul.addr %s1869, 128
          %s1871 = scalar_lea.hbm %s5, %s1870
          %s1872 = sshll.u32 %s1860, 4
          %s1873 = int_to_ptr.vmem [resolvable:$true] %s1872
          %1878 = dma.vmem_to_hbm [thread:$0]  %s1873, 256, %s1871, %s1857, 128, 128, 8
        $region44: #{tpu_custom_call.1} parent=39 // pred_fallthru
          _
      $region40: #{tpu_custom_call.1} parent=5 // pred_fallthru
        _
      %p1879 = scmp.le.s32.totalorder 2, %s14
      // Predicated region
      $region45: #{tpu_custom_call.1} parent=5 // pred_check
        %p1880 = pneg %p1879
      $region46: #{tpu_custom_call.1} parent=5 // pred_check_branch
        %1882 = sbr.rel (%p1880) target = $region48
      $region47: #{tpu_custom_call.1} parent=5 // pred_region
        %s1883 = ssub.s32 %s14, 2
        // Predicated region
        $region49: #{tpu_custom_call.1} parent=47 // pred_check
          %p1884 = pneg %p186
        $region50: #{tpu_custom_call.1} parent=47 // pred_check_branch
          %1886 = sbr.rel (%p1884) target = $region52
        $region51: #{tpu_custom_call.1} parent=47 // pred_region
          %s1887 = sand.u32 %s171, 1
          %s1888 = scalar_lea.sflag [#allocation3], %s1887
          %s1889 = sand.u32 %s171, 1
          %s1890 = smul.addr %s1889, 16
          %s1891 = scalar_lea.vmem [#allocation2], %s1890
          %1892 = dma.done %s1888, 256
        $region52: #{tpu_custom_call.1} parent=47 // pred_fallthru
          _
      $region48: #{tpu_custom_call.1} parent=5 // pred_fallthru
        _
    $region6: #{tpu_custom_call.1} parent=1 // loop_footer
      %s18 = sadd.s32 1, %s14
    $region7: #{tpu_custom_call.1} parent=1 // loop_footer_branch
      %13 = sbr.rel target = $region3
    $region8: #{tpu_custom_call.1} parent=1 // loop_exit
      _
    %1893 = vsyncpa [#allocation3], 1
    %s1894 = scalar_lea.sflag [#allocation3], 1
    %1895 = vsyncpa %s1894, 1

</llo_original>
